<compile_context>
chip_gen: v5e
topology: v5e:2x2
jax: 0.10.0
libtpu: 0.0.40
codegen_flags: <defaults>
</compile_context>

<pallas_src>
import functools
import math

import jax
import jax.numpy as jnp
from jax.experimental import pallas as pl
from jax.experimental.pallas import tpu as pltpu  # noqa: F401  (TPU backend assumed)


# ----------------------------------------------------------------------------
# Model config (small shapes consistent with the module)
# ----------------------------------------------------------------------------
B, C, H, W = 2, 4, 16, 16
PATCH = 4
N_MODALITIES = 2                      # channel split: two image-encoder streams
C_MOD = C // N_MODALITIES
HP, WP = H // PATCH, W // PATCH
N_TOK = HP * WP                       # 16 tokens per image
ROWS = B * N_TOK                      # 32 token rows, processed in one step
P_FEAT = C_MOD * PATCH * PATCH        # per-modality patch feature size (32)
PATCH_FEAT = C * PATCH * PATCH        # all-modality patch feature size (64)
EMBED = 32
HEADS = 2
HEAD_DIM = EMBED // HEADS
MLP_DIM = 4 * EMBED                   # 128 (naturally lane-dense)
N_CLS = 3
LANE = 128                            # lane-dense padded width for all slabs
LN_EPS = 1e-5                         # PyTorch nn.LayerNorm default

N_WMATS = 12                          # weight-slab entries
N_BROWS = 11                          # bias-slab rows


def _bf16(x):
    return x.astype(jnp.bfloat16)


# ----------------------------------------------------------------------------
# Fused forward kernel — single invocation, all weights resident in VMEM.
#
# Weight slab (bf16, [12, 128, 128]):
#   0            : W_comb   (patch-embed + fuse, rows 0:64, cols 0:32)
#   1+3h,2+3h,3+3h : Wq_h, Wk_h, Wv_h  (rows 0:32, cols 0:16; LN1 gamma and
#                    1/sqrt(head_dim) folded into Q)
#   7+h          : Wproj_h  (rows 0:16, cols 0:32)
#   9            : Wmlp1    (rows 0:32, cols 0:128; LN2 gamma folded)
#   10           : Wmlp2    (rows 0:128, cols 0:32)
#   11           : Whead    (rows 0:32, cols 0:3; LNh gamma folded)
# Bias slab (f32, [11, 128]): same ordering (comb, qkv x6, proj, mlp1, mlp2, head).
# All padding is exact zeros, so 128-wide matmuls are algebraically exact.
# ----------------------------------------------------------------------------
def _fused_forward_kernel(patches_ref, w_ref, b_ref, logits_ref, embed_ref):
    f32 = jnp.float32

    def wmat(i):                       # static leading-dim index: no lane slicing
        return w_ref[i]                # [128, 128] bf16

    def brow(i):                       # static sublane slice
        return b_ref[i:i + 1, :]       # [1, 128] f32

    def ln(x):
        # LayerNorm (biased variance, gamma/beta folded downstream) computed on
        # the 128-wide padded slab: pad columns of x are exactly zero, so raw
        # moments over all 128 lanes divided by EMBED are the true moments of
        # the 32 valid columns. Pad columns of the result are garbage but are
        # multiplied by zero weight rows downstream.
        s1 = jnp.sum(x, axis=-1, keepdims=True)
        s2 = jnp.sum(x * x, axis=-1, keepdims=True)
        mu = s1 * (1.0 / EMBED)
        var = s2 * (1.0 / EMBED) - mu * mu
        return (x - mu) * jax.lax.rsqrt(var + LN_EPS)

    patches = patches_ref[...]                               # [32, 128] bf16

    # ---- patch-embed + modality fusion, collapsed into one matmul ----
    tokens = (jnp.dot(patches, wmat(0), preferred_element_type=f32)
              + brow(0))                                     # [32, 128] f32, pads 0

    # ---- transformer encoder block: MHSA ----
    xn1 = _bf16(ln(tokens))
    qkv = []
    for h in range(HEADS):                                   # static unroll (2)
        qh = _bf16(jnp.dot(xn1, wmat(1 + 3 * h), preferred_element_type=f32)
                   + brow(1 + 3 * h))                        # scale folded in
        kh = _bf16(jnp.dot(xn1, wmat(2 + 3 * h), preferred_element_type=f32)
                   + brow(2 + 3 * h))
        vh = _bf16(jnp.dot(xn1, wmat(3 + 3 * h), preferred_element_type=f32)
                   + brow(3 + 3 * h))
        qkv.append((qh, kh, vh))                             # [32,128], pads 0

    batch_rows = []
    for b in range(B):                                       # static unroll (2)
        lo = b * N_TOK                                       # sublane-tile aligned
        acc = None
        for h in range(HEADS):
            qh, kh, vh = qkv[h]
            qb = qh[lo:lo + N_TOK]                           # [16, 128]
            kb = kh[lo:lo + N_TOK]
            vb = vh[lo:lo + N_TOK]
            # q . k^T without materializing a transpose (contract dim 1 of both).
            s = jax.lax.dot_general(qb, kb, (((1,), (1,)), ((), ())),
                                    preferred_element_type=f32)   # [16, 16]
            s = s - jnp.max(s, axis=-1, keepdims=True)
            p = jnp.exp(s)
            p = p * pl.reciprocal(jnp.sum(p, axis=-1, keepdims=True), approx=True)
            o = jnp.dot(_bf16(p), vb, preferred_element_type=f32)      # [16, 128]
            contrib = jnp.dot(_bf16(o), wmat(7 + h),
                              preferred_element_type=f32)             # [16, 128]
            acc = contrib if acc is None else acc + contrib
        batch_rows.append(acc)
    attn = jnp.concatenate(batch_rows, axis=0)               # sublane concat, aligned
    tokens = tokens + attn + brow(7)                         # residual, pads stay 0

    # ---- transformer encoder block: MLP ----
    xn2 = _bf16(ln(tokens))
    hmid = jnp.dot(xn2, wmat(9), preferred_element_type=f32) + brow(8)   # [32, 128]
    # TODO(synk): PyTorch nn.GELU defaults to exact erf; tanh approximation used here.
    hmid = jax.nn.gelu(hmid)
    mlp = jnp.dot(_bf16(hmid), wmat(10), preferred_element_type=f32) + brow(9)
    tokens = tokens + mlp                                    # residual, pads stay 0

    # Image embedding output: 128-lane-dense padded slab (sliced in wrapper).
    embed_ref[...] = tokens.astype(embed_ref.dtype)

    # ---- segmentation head (128-lane-dense padded output) ----
    xnh = _bf16(ln(tokens))
    logits = jnp.dot(xnh, wmat(11), preferred_element_type=f32) + brow(10)
    logits_ref[...] = logits.astype(logits_ref.dtype)


# ----------------------------------------------------------------------------
# Deterministic parameter init (same structure as the reference module)
# ----------------------------------------------------------------------------
def init_params(key):
    def dense(k, fan_in, fan_out):
        kw, _ = jax.random.split(k)
        w = 0.02 * jax.random.normal(kw, (fan_in, fan_out), jnp.float32)
        b = jnp.zeros((fan_out,), jnp.float32)
        return {"w": w, "b": b}

    keys = jax.random.split(key, 16)
    p = {}
    p["patch_embed"] = [dense(keys[m], P_FEAT, EMBED) for m in range(N_MODALITIES)]
    p["fuse"] = dense(keys[2], N_MODALITIES * EMBED, EMBED)
    p["ln1_g"] = jnp.ones((EMBED,), jnp.float32)
    p["ln1_b"] = jnp.zeros((EMBED,), jnp.float32)
    p["qkv"] = dense(keys[3], EMBED, 3 * EMBED)
    p["proj"] = dense(keys[4], EMBED, EMBED)
    p["ln2_g"] = jnp.ones((EMBED,), jnp.float32)
    p["ln2_b"] = jnp.zeros((EMBED,), jnp.float32)
    p["mlp1"] = dense(keys[5], EMBED, MLP_DIM)
    p["mlp2"] = dense(keys[6], MLP_DIM, EMBED)
    p["lnh_g"] = jnp.ones((EMBED,), jnp.float32)
    p["lnh_b"] = jnp.zeros((EMBED,), jnp.float32)
    p["head"] = dense(keys[7], EMBED, N_CLS)
    return p


# ----------------------------------------------------------------------------
# Operand prep: fold LN gammas/betas, attention scale and patch-embed+fuse into
# the weights, then pack everything into two 128-lane-padded slabs.
# ----------------------------------------------------------------------------
def _prep_operands(params):
    def padmat(wm):                    # [K, N] -> [128, 128] zero-padded
        k, n = wm.shape
        return jnp.zeros((LANE, LANE), jnp.float32).at[:k, :n].set(wm)

    def padrow(v):                     # [N] -> [128] zero-padded
        return jnp.zeros((LANE,), jnp.float32).at[:v.shape[0]].set(v)

    pe0, pe1 = params["patch_embed"]
    fuse_w, fuse_b = params["fuse"]["w"], params["fuse"]["b"]
    fw0, fw1 = fuse_w[:EMBED], fuse_w[EMBED:]

    # concat(p0@W0+b0, p1@W1+b1) @ [fw0; fw1] + fb  ==  patches @ W_comb + b_comb
    w_comb = jnp.concatenate([pe0["w"] @ fw0, pe1["w"] @ fw1], axis=0)   # [64, 32]
    b_comb = pe0["b"] @ fw0 + pe1["b"] @ fw1 + fuse_b                    # [32]

    g1, be1 = params["ln1_g"], params["ln1_b"]
    qkv_w, qkv_b = params["qkv"]["w"], params["qkv"]["b"]
    scale = 1.0 / math.sqrt(HEAD_DIM)

    w_list = [w_comb]
    b_list = [b_comb]
    for h in range(HEADS):
        sl_q = slice(h * HEAD_DIM, (h + 1) * HEAD_DIM)
        sl_k = slice(EMBED + h * HEAD_DIM, EMBED + (h + 1) * HEAD_DIM)
        sl_v = slice(2 * EMBED + h * HEAD_DIM, 2 * EMBED + (h + 1) * HEAD_DIM)
        wq, wk, wv = qkv_w[:, sl_q], qkv_w[:, sl_k], qkv_w[:, sl_v]
        bq, bk, bv = qkv_b[sl_q], qkv_b[sl_k], qkv_b[sl_v]
        # Fold LN1 gamma into all of Q/K/V; fold softmax scale into Q only.
        w_list += [(g1[:, None] * wq) * scale, g1[:, None] * wk, g1[:, None] * wv]
        b_list += [(be1 @ wq + bq) * scale, be1 @ wk + bk, be1 @ wv + bv]

    proj_w, proj_b = params["proj"]["w"], params["proj"]["b"]
    for h in range(HEADS):             # concat(heads)@Wproj == sum_h o_h @ Wproj_h
        w_list.append(proj_w[h * HEAD_DIM:(h + 1) * HEAD_DIM, :])
    b_list.append(proj_b)

    g2, be2 = params["ln2_g"], params["ln2_b"]
    w_list += [g2[:, None] * params["mlp1"]["w"], params["mlp2"]["w"]]
    b_list += [be2 @ params["mlp1"]["w"] + params["mlp1"]["b"], params["mlp2"]["b"]]

    gh, beh = params["lnh_g"], params["lnh_b"]
    head_w, head_b = params["head"]["w"], params["head"]["b"]
    w_list.append(gh[:, None] * head_w)
    b_list.append(beh @ head_w + head_b)

    wslab = jnp.stack([padmat(wm) for wm in w_list]).astype(jnp.bfloat16)  # [12,128,128]
    bslab = jnp.stack([padrow(bv) for bv in b_list]).astype(jnp.float32)   # [11,128]
    return wslab, bslab


# ----------------------------------------------------------------------------
# Wrapper: patchify + single fused pallas_call + head/upsample glue (one jit)
# ----------------------------------------------------------------------------
@functools.partial(jax.jit, static_argnames=("mode", "require_embed"))
def multimodel_seg_forward(params, batched_input, mode="train", require_embed=False):
    x = batched_input.astype(jnp.float32)                   # NCHW [B, C, H, W]

    # Patchify (PyTorch-conv (C, ph, pw) feature order); modality m occupies the
    # contiguous column block [m*P_FEAT, (m+1)*P_FEAT). Pad to 128 lanes (zeros).
    xp = x.reshape(B, C, HP, PATCH, WP, PATCH)
    xp = jnp.transpose(xp, (0, 2, 4, 1, 3, 5))               # [B, HP, WP, C, p, p]
    patches = xp.reshape(ROWS, PATCH_FEAT)
    patches = jnp.pad(patches, ((0, 0), (0, LANE - PATCH_FEAT))).astype(jnp.bfloat16)

    wslab, bslab = _prep_operands(params)

    # Single invocation (no grid): whole arrays live in VMEM, 3 input DMAs,
    # both outputs written as 128-lane-dense slabs.
    logits_pad, embed_pad = pl.pallas_call(
        _fused_forward_kernel,
        out_shape=(
            jax.ShapeDtypeStruct((ROWS, LANE), jnp.float32),   # padded logits
            jax.ShapeDtypeStruct((ROWS, LANE), jnp.float32),   # padded embedding
        ),
    )(patches, wslab, bslab)

    # Per-patch logits -> NCHW masks; nearest-neighbour upsample as one
    # reshape+broadcast+reshape (single materialization), all under this jit.
    logits = logits_pad[:, :N_CLS].reshape(B, HP, WP, N_CLS)
    logits = jnp.transpose(logits, (0, 3, 1, 2))              # [B, n_cls, HP, WP]
    masks = jnp.broadcast_to(
        logits[:, :, :, None, :, None],
        (B, N_CLS, HP, PATCH, WP, PATCH),
    ).reshape(B, N_CLS, H, W)

    if require_embed:
        image_embed = embed_pad[:, :EMBED].reshape(B, N_TOK, EMBED)
        return masks, image_embed
    return masks


class FullFT_MultiModelSeg:
    """JAX/Pallas analogue of the PyTorch wrapper: forward == wrapped model."""
    # TODO(synk): save_lora_parameters / load_lora_parameters (.pt checkpoint
    # I/O) and requires_grad freezing are training/serialization-only; no
    # forward-pass equivalent.

    def __init__(self, params, model_freeze_list=()):
        self.params = params
        self.model_freeze_list = tuple(model_freeze_list)

    def __call__(self, batched_input, mode="train", require_embed=False):
        return multimodel_seg_forward(
            self.params, batched_input, mode=mode, require_embed=require_embed
        )


# ----------------------------------------------------------------------------
if __name__ == "__main__":
    key = jax.random.PRNGKey(0)
    k_param, k_input = jax.random.split(key)
    params = init_params(k_param)
    x = jax.random.normal(k_input, (B, C, H, W), jnp.float32)

    model = FullFT_MultiModelSeg(params, model_freeze_list=["image_encoder_0"])
    masks, embed = model(x, mode="train", require_embed=True)
    masks = jax.block_until_ready(masks)
    embed = jax.block_until_ready(embed)

    assert masks.shape == (B, N_CLS, H, W), masks.shape
    assert embed.shape == (B, N_TOK, EMBED), embed.shape
    assert bool(jnp.all(jnp.isfinite(masks)))
    assert bool(jnp.all(jnp.isfinite(embed)))
    print("KERNEL_OK")
</pallas_src>

<mosaic_0001>
module attributes {stable_mosaic.version = 11 : i64} {
  func.func @_fused_forward_kernel(%arg0: memref<32x128xbf16, #tpu.memory_space<vmem>>, %arg1: memref<12x128x128xbf16, #tpu.memory_space<vmem>>, %arg2: memref<11x128xf32, #tpu.memory_space<vmem>>, %arg3: memref<32x128xf32, #tpu.memory_space<vmem>>, %arg4: memref<32x128xf32, #tpu.memory_space<vmem>>) attributes {dimension_semantics = [], scalar_prefetch = 0 : i64, scratch_operands = 0 : i64, tpu.core_type = #tpu.core_type<tc>} {
    %c0 = arith.constant 0 : index
    %c0_0 = arith.constant 0 : index
    %0 = vector.load %arg0[%c0, %c0_0] : memref<32x128xbf16, #tpu.memory_space<vmem>>, vector<32x128xbf16>
    %c0_1 = arith.constant 0 : index
    %c0_2 = arith.constant 0 : index
    %c0_3 = arith.constant 0 : index
    %1 = vector.load %arg1[%c0_1, %c0_2, %c0_3] : memref<12x128x128xbf16, #tpu.memory_space<vmem>>, vector<1x128x128xbf16>
    %2 = vector.shape_cast %1 : vector<1x128x128xbf16> to vector<128x128xbf16>
    %cst = arith.constant dense<0.000000e+00> : vector<32x128xf32>
    %3 = tpu.matmul %0, %2, %cst {dimension_numbers = #tpu.dot_dimension_numbers<[1], [0], [0], [1], [0, 0, 1, 1], [], []>} : vector<32x128xbf16>, vector<128x128xbf16>, vector<32x128xf32> -> vector<32x128xf32>
    %c0_4 = arith.constant 0 : index
    %c0_5 = arith.constant 0 : index
    %4 = vector.load %arg2[%c0_4, %c0_5] : memref<11x128xf32, #tpu.memory_space<vmem>>, vector<1x128xf32>
    %5 = vector.broadcast %4 : vector<1x128xf32> to vector<32x128xf32>
    %6 = arith.addf %3, %5 : vector<32x128xf32>
    %cst_6 = arith.constant dense<0.000000e+00> : vector<32xf32>
    %7 = vector.multi_reduction <add>, %6, %cst_6 [1] : vector<32x128xf32> to vector<32xf32>
    %8 = vector.shape_cast %7 : vector<32xf32> to vector<32x1xf32>
    %9 = arith.mulf %6, %6 : vector<32x128xf32>
    %cst_7 = arith.constant dense<0.000000e+00> : vector<32xf32>
    %10 = vector.multi_reduction <add>, %9, %cst_7 [1] : vector<32x128xf32> to vector<32xf32>
    %11 = vector.shape_cast %10 : vector<32xf32> to vector<32x1xf32>
    %cst_8 = arith.constant 3.125000e-02 : f32
    %12 = vector.broadcast %cst_8 : f32 to vector<32x1xf32>
    %13 = arith.mulf %8, %12 : vector<32x1xf32>
    %cst_9 = arith.constant 3.125000e-02 : f32
    %14 = vector.broadcast %cst_9 : f32 to vector<32x1xf32>
    %15 = arith.mulf %11, %14 : vector<32x1xf32>
    %16 = arith.mulf %13, %13 : vector<32x1xf32>
    %17 = arith.subf %15, %16 : vector<32x1xf32>
    %18 = vector.broadcast %13 : vector<32x1xf32> to vector<32x128xf32>
    %19 = arith.subf %6, %18 : vector<32x128xf32>
    %cst_10 = arith.constant 9.99999974E-6 : f32
    %20 = vector.broadcast %cst_10 : f32 to vector<32x1xf32>
    %21 = arith.addf %17, %20 : vector<32x1xf32>
    %22 = math.rsqrt %21 : vector<32x1xf32>
    %23 = vector.broadcast %22 : vector<32x1xf32> to vector<32x128xf32>
    %24 = arith.mulf %19, %23 : vector<32x128xf32>
    %25 = arith.truncf %24 : vector<32x128xf32> to vector<32x128xbf16>
    %c1 = arith.constant 1 : index
    %c0_11 = arith.constant 0 : index
    %c0_12 = arith.constant 0 : index
    %26 = vector.load %arg1[%c1, %c0_11, %c0_12] : memref<12x128x128xbf16, #tpu.memory_space<vmem>>, vector<1x128x128xbf16>
    %27 = vector.shape_cast %26 : vector<1x128x128xbf16> to vector<128x128xbf16>
    %cst_13 = arith.constant dense<0.000000e+00> : vector<32x128xf32>
    %28 = tpu.matmul %25, %27, %cst_13 {dimension_numbers = #tpu.dot_dimension_numbers<[1], [0], [0], [1], [0, 0, 1, 1], [], []>} : vector<32x128xbf16>, vector<128x128xbf16>, vector<32x128xf32> -> vector<32x128xf32>
    %c1_14 = arith.constant 1 : index
    %c0_15 = arith.constant 0 : index
    %29 = vector.load %arg2[%c1_14, %c0_15] : memref<11x128xf32, #tpu.memory_space<vmem>>, vector<1x128xf32>
    %30 = vector.broadcast %29 : vector<1x128xf32> to vector<32x128xf32>
    %31 = arith.addf %28, %30 : vector<32x128xf32>
    %32 = arith.truncf %31 : vector<32x128xf32> to vector<32x128xbf16>
    %c2 = arith.constant 2 : index
    %c0_16 = arith.constant 0 : index
    %c0_17 = arith.constant 0 : index
    %33 = vector.load %arg1[%c2, %c0_16, %c0_17] : memref<12x128x128xbf16, #tpu.memory_space<vmem>>, vector<1x128x128xbf16>
    %34 = vector.shape_cast %33 : vector<1x128x128xbf16> to vector<128x128xbf16>
    %cst_18 = arith.constant dense<0.000000e+00> : vector<32x128xf32>
    %35 = tpu.matmul %25, %34, %cst_18 {dimension_numbers = #tpu.dot_dimension_numbers<[1], [0], [0], [1], [0, 0, 1, 1], [], []>} : vector<32x128xbf16>, vector<128x128xbf16>, vector<32x128xf32> -> vector<32x128xf32>
    %c2_19 = arith.constant 2 : index
    %c0_20 = arith.constant 0 : index
    %36 = vector.load %arg2[%c2_19, %c0_20] : memref<11x128xf32, #tpu.memory_space<vmem>>, vector<1x128xf32>
    %37 = vector.broadcast %36 : vector<1x128xf32> to vector<32x128xf32>
    %38 = arith.addf %35, %37 : vector<32x128xf32>
    %39 = arith.truncf %38 : vector<32x128xf32> to vector<32x128xbf16>
    %c3 = arith.constant 3 : index
    %c0_21 = arith.constant 0 : index
    %c0_22 = arith.constant 0 : index
    %40 = vector.load %arg1[%c3, %c0_21, %c0_22] : memref<12x128x128xbf16, #tpu.memory_space<vmem>>, vector<1x128x128xbf16>
    %41 = vector.shape_cast %40 : vector<1x128x128xbf16> to vector<128x128xbf16>
    %cst_23 = arith.constant dense<0.000000e+00> : vector<32x128xf32>
    %42 = tpu.matmul %25, %41, %cst_23 {dimension_numbers = #tpu.dot_dimension_numbers<[1], [0], [0], [1], [0, 0, 1, 1], [], []>} : vector<32x128xbf16>, vector<128x128xbf16>, vector<32x128xf32> -> vector<32x128xf32>
    %c3_24 = arith.constant 3 : index
    %c0_25 = arith.constant 0 : index
    %43 = vector.load %arg2[%c3_24, %c0_25] : memref<11x128xf32, #tpu.memory_space<vmem>>, vector<1x128xf32>
    %44 = vector.broadcast %43 : vector<1x128xf32> to vector<32x128xf32>
    %45 = arith.addf %42, %44 : vector<32x128xf32>
    %46 = arith.truncf %45 : vector<32x128xf32> to vector<32x128xbf16>
    %c4 = arith.constant 4 : index
    %c0_26 = arith.constant 0 : index
    %c0_27 = arith.constant 0 : index
    %47 = vector.load %arg1[%c4, %c0_26, %c0_27] : memref<12x128x128xbf16, #tpu.memory_space<vmem>>, vector<1x128x128xbf16>
    %48 = vector.shape_cast %47 : vector<1x128x128xbf16> to vector<128x128xbf16>
    %cst_28 = arith.constant dense<0.000000e+00> : vector<32x128xf32>
    %49 = tpu.matmul %25, %48, %cst_28 {dimension_numbers = #tpu.dot_dimension_numbers<[1], [0], [0], [1], [0, 0, 1, 1], [], []>} : vector<32x128xbf16>, vector<128x128xbf16>, vector<32x128xf32> -> vector<32x128xf32>
    %c4_29 = arith.constant 4 : index
    %c0_30 = arith.constant 0 : index
    %50 = vector.load %arg2[%c4_29, %c0_30] : memref<11x128xf32, #tpu.memory_space<vmem>>, vector<1x128xf32>
    %51 = vector.broadcast %50 : vector<1x128xf32> to vector<32x128xf32>
    %52 = arith.addf %49, %51 : vector<32x128xf32>
    %53 = arith.truncf %52 : vector<32x128xf32> to vector<32x128xbf16>
    %c5 = arith.constant 5 : index
    %c0_31 = arith.constant 0 : index
    %c0_32 = arith.constant 0 : index
    %54 = vector.load %arg1[%c5, %c0_31, %c0_32] : memref<12x128x128xbf16, #tpu.memory_space<vmem>>, vector<1x128x128xbf16>
    %55 = vector.shape_cast %54 : vector<1x128x128xbf16> to vector<128x128xbf16>
    %cst_33 = arith.constant dense<0.000000e+00> : vector<32x128xf32>
    %56 = tpu.matmul %25, %55, %cst_33 {dimension_numbers = #tpu.dot_dimension_numbers<[1], [0], [0], [1], [0, 0, 1, 1], [], []>} : vector<32x128xbf16>, vector<128x128xbf16>, vector<32x128xf32> -> vector<32x128xf32>
    %c5_34 = arith.constant 5 : index
    %c0_35 = arith.constant 0 : index
    %57 = vector.load %arg2[%c5_34, %c0_35] : memref<11x128xf32, #tpu.memory_space<vmem>>, vector<1x128xf32>
    %58 = vector.broadcast %57 : vector<1x128xf32> to vector<32x128xf32>
    %59 = arith.addf %56, %58 : vector<32x128xf32>
    %60 = arith.truncf %59 : vector<32x128xf32> to vector<32x128xbf16>
    %c6 = arith.constant 6 : index
    %c0_36 = arith.constant 0 : index
    %c0_37 = arith.constant 0 : index
    %61 = vector.load %arg1[%c6, %c0_36, %c0_37] : memref<12x128x128xbf16, #tpu.memory_space<vmem>>, vector<1x128x128xbf16>
    %62 = vector.shape_cast %61 : vector<1x128x128xbf16> to vector<128x128xbf16>
    %cst_38 = arith.constant dense<0.000000e+00> : vector<32x128xf32>
    %63 = tpu.matmul %25, %62, %cst_38 {dimension_numbers = #tpu.dot_dimension_numbers<[1], [0], [0], [1], [0, 0, 1, 1], [], []>} : vector<32x128xbf16>, vector<128x128xbf16>, vector<32x128xf32> -> vector<32x128xf32>
    %c6_39 = arith.constant 6 : index
    %c0_40 = arith.constant 0 : index
    %64 = vector.load %arg2[%c6_39, %c0_40] : memref<11x128xf32, #tpu.memory_space<vmem>>, vector<1x128xf32>
    %65 = vector.broadcast %64 : vector<1x128xf32> to vector<32x128xf32>
    %66 = arith.addf %63, %65 : vector<32x128xf32>
    %67 = arith.truncf %66 : vector<32x128xf32> to vector<32x128xbf16>
    %68 = vector.extract_strided_slice %32 {offsets = [0, 0], sizes = [16, 128], strides = [1, 1]} : vector<32x128xbf16> to vector<16x128xbf16>
    %69 = vector.extract_strided_slice %39 {offsets = [0, 0], sizes = [16, 128], strides = [1, 1]} : vector<32x128xbf16> to vector<16x128xbf16>
    %70 = vector.extract_strided_slice %46 {offsets = [0, 0], sizes = [16, 128], strides = [1, 1]} : vector<32x128xbf16> to vector<16x128xbf16>
    %cst_41 = arith.constant dense<0.000000e+00> : vector<16x16xf32>
    %71 = tpu.matmul %68, %69, %cst_41 {dimension_numbers = #tpu.dot_dimension_numbers<[1], [1], [0], [0], [0, 0, 1, 0], [], []>} : vector<16x128xbf16>, vector<16x128xbf16>, vector<16x16xf32> -> vector<16x16xf32>
    %cst_42 = arith.constant dense<0xFF800000> : vector<16xf32>
    %72 = vector.multi_reduction <maximumf>, %71, %cst_42 [1] : vector<16x16xf32> to vector<16xf32>
    %73 = vector.shape_cast %72 : vector<16xf32> to vector<16x1xf32>
    %74 = vector.broadcast %73 : vector<16x1xf32> to vector<16x16xf32>
    %75 = arith.subf %71, %74 : vector<16x16xf32>
    %76 = math.exp %75 : vector<16x16xf32>
    %cst_43 = arith.constant dense<0.000000e+00> : vector<16xf32>
    %77 = vector.multi_reduction <add>, %76, %cst_43 [1] : vector<16x16xf32> to vector<16xf32>
    %78 = vector.shape_cast %77 : vector<16xf32> to vector<16x1xf32>
    %79 = tpu.reciprocal %78 {approx = true} : vector<16x1xf32> -> vector<16x1xf32>
    %80 = vector.broadcast %79 : vector<16x1xf32> to vector<16x16xf32>
    %81 = arith.mulf %76, %80 : vector<16x16xf32>
    %82 = arith.truncf %81 : vector<16x16xf32> to vector<16x16xbf16>
    %cst_44 = arith.constant dense<0.000000e+00> : vector<16x128xf32>
    %83 = tpu.matmul %82, %70, %cst_44 {dimension_numbers = #tpu.dot_dimension_numbers<[1], [0], [0], [1], [0, 0, 1, 1], [], []>} : vector<16x16xbf16>, vector<16x128xbf16>, vector<16x128xf32> -> vector<16x128xf32>
    %84 = arith.truncf %83 : vector<16x128xf32> to vector<16x128xbf16>
    %c7 = arith.constant 7 : index
    %c0_45 = arith.constant 0 : index
    %c0_46 = arith.constant 0 : index
    %85 = vector.load %arg1[%c7, %c0_45, %c0_46] : memref<12x128x128xbf16, #tpu.memory_space<vmem>>, vector<1x128x128xbf16>
    %86 = vector.shape_cast %85 : vector<1x128x128xbf16> to vector<128x128xbf16>
    %cst_47 = arith.constant dense<0.000000e+00> : vector<16x128xf32>
    %87 = tpu.matmul %84, %86, %cst_47 {dimension_numbers = #tpu.dot_dimension_numbers<[1], [0], [0], [1], [0, 0, 1, 1], [], []>} : vector<16x128xbf16>, vector<128x128xbf16>, vector<16x128xf32> -> vector<16x128xf32>
    %88 = vector.extract_strided_slice %53 {offsets = [0, 0], sizes = [16, 128], strides = [1, 1]} : vector<32x128xbf16> to vector<16x128xbf16>
    %89 = vector.extract_strided_slice %60 {offsets = [0, 0], sizes = [16, 128], strides = [1, 1]} : vector<32x128xbf16> to vector<16x128xbf16>
    %90 = vector.extract_strided_slice %67 {offsets = [0, 0], sizes = [16, 128], strides = [1, 1]} : vector<32x128xbf16> to vector<16x128xbf16>
    %cst_48 = arith.constant dense<0.000000e+00> : vector<16x16xf32>
    %91 = tpu.matmul %88, %89, %cst_48 {dimension_numbers = #tpu.dot_dimension_numbers<[1], [1], [0], [0], [0, 0, 1, 0], [], []>} : vector<16x128xbf16>, vector<16x128xbf16>, vector<16x16xf32> -> vector<16x16xf32>
    %cst_49 = arith.constant dense<0xFF800000> : vector<16xf32>
    %92 = vector.multi_reduction <maximumf>, %91, %cst_49 [1] : vector<16x16xf32> to vector<16xf32>
    %93 = vector.shape_cast %92 : vector<16xf32> to vector<16x1xf32>
    %94 = vector.broadcast %93 : vector<16x1xf32> to vector<16x16xf32>
    %95 = arith.subf %91, %94 : vector<16x16xf32>
    %96 = math.exp %95 : vector<16x16xf32>
    %cst_50 = arith.constant dense<0.000000e+00> : vector<16xf32>
    %97 = vector.multi_reduction <add>, %96, %cst_50 [1] : vector<16x16xf32> to vector<16xf32>
    %98 = vector.shape_cast %97 : vector<16xf32> to vector<16x1xf32>
    %99 = tpu.reciprocal %98 {approx = true} : vector<16x1xf32> -> vector<16x1xf32>
    %100 = vector.broadcast %99 : vector<16x1xf32> to vector<16x16xf32>
    %101 = arith.mulf %96, %100 : vector<16x16xf32>
    %102 = arith.truncf %101 : vector<16x16xf32> to vector<16x16xbf16>
    %cst_51 = arith.constant dense<0.000000e+00> : vector<16x128xf32>
    %103 = tpu.matmul %102, %90, %cst_51 {dimension_numbers = #tpu.dot_dimension_numbers<[1], [0], [0], [1], [0, 0, 1, 1], [], []>} : vector<16x16xbf16>, vector<16x128xbf16>, vector<16x128xf32> -> vector<16x128xf32>
    %104 = arith.truncf %103 : vector<16x128xf32> to vector<16x128xbf16>
    %c8 = arith.constant 8 : index
    %c0_52 = arith.constant 0 : index
    %c0_53 = arith.constant 0 : index
    %105 = vector.load %arg1[%c8, %c0_52, %c0_53] : memref<12x128x128xbf16, #tpu.memory_space<vmem>>, vector<1x128x128xbf16>
    %106 = vector.shape_cast %105 : vector<1x128x128xbf16> to vector<128x128xbf16>
    %cst_54 = arith.constant dense<0.000000e+00> : vector<16x128xf32>
    %107 = tpu.matmul %104, %106, %cst_54 {dimension_numbers = #tpu.dot_dimension_numbers<[1], [0], [0], [1], [0, 0, 1, 1], [], []>} : vector<16x128xbf16>, vector<128x128xbf16>, vector<16x128xf32> -> vector<16x128xf32>
    %108 = arith.addf %87, %107 : vector<16x128xf32>
    %109 = vector.extract_strided_slice %32 {offsets = [16, 0], sizes = [16, 128], strides = [1, 1]} : vector<32x128xbf16> to vector<16x128xbf16>
    %110 = vector.extract_strided_slice %39 {offsets = [16, 0], sizes = [16, 128], strides = [1, 1]} : vector<32x128xbf16> to vector<16x128xbf16>
    %111 = vector.extract_strided_slice %46 {offsets = [16, 0], sizes = [16, 128], strides = [1, 1]} : vector<32x128xbf16> to vector<16x128xbf16>
    %cst_55 = arith.constant dense<0.000000e+00> : vector<16x16xf32>
    %112 = tpu.matmul %109, %110, %cst_55 {dimension_numbers = #tpu.dot_dimension_numbers<[1], [1], [0], [0], [0, 0, 1, 0], [], []>} : vector<16x128xbf16>, vector<16x128xbf16>, vector<16x16xf32> -> vector<16x16xf32>
    %cst_56 = arith.constant dense<0xFF800000> : vector<16xf32>
    %113 = vector.multi_reduction <maximumf>, %112, %cst_56 [1] : vector<16x16xf32> to vector<16xf32>
    %114 = vector.shape_cast %113 : vector<16xf32> to vector<16x1xf32>
    %115 = vector.broadcast %114 : vector<16x1xf32> to vector<16x16xf32>
    %116 = arith.subf %112, %115 : vector<16x16xf32>
    %117 = math.exp %116 : vector<16x16xf32>
    %cst_57 = arith.constant dense<0.000000e+00> : vector<16xf32>
    %118 = vector.multi_reduction <add>, %117, %cst_57 [1] : vector<16x16xf32> to vector<16xf32>
    %119 = vector.shape_cast %118 : vector<16xf32> to vector<16x1xf32>
    %120 = tpu.reciprocal %119 {approx = true} : vector<16x1xf32> -> vector<16x1xf32>
    %121 = vector.broadcast %120 : vector<16x1xf32> to vector<16x16xf32>
    %122 = arith.mulf %117, %121 : vector<16x16xf32>
    %123 = arith.truncf %122 : vector<16x16xf32> to vector<16x16xbf16>
    %cst_58 = arith.constant dense<0.000000e+00> : vector<16x128xf32>
    %124 = tpu.matmul %123, %111, %cst_58 {dimension_numbers = #tpu.dot_dimension_numbers<[1], [0], [0], [1], [0, 0, 1, 1], [], []>} : vector<16x16xbf16>, vector<16x128xbf16>, vector<16x128xf32> -> vector<16x128xf32>
    %125 = arith.truncf %124 : vector<16x128xf32> to vector<16x128xbf16>
    %c7_59 = arith.constant 7 : index
    %c0_60 = arith.constant 0 : index
    %c0_61 = arith.constant 0 : index
    %126 = vector.load %arg1[%c7_59, %c0_60, %c0_61] : memref<12x128x128xbf16, #tpu.memory_space<vmem>>, vector<1x128x128xbf16>
    %127 = vector.shape_cast %126 : vector<1x128x128xbf16> to vector<128x128xbf16>
    %cst_62 = arith.constant dense<0.000000e+00> : vector<16x128xf32>
    %128 = tpu.matmul %125, %127, %cst_62 {dimension_numbers = #tpu.dot_dimension_numbers<[1], [0], [0], [1], [0, 0, 1, 1], [], []>} : vector<16x128xbf16>, vector<128x128xbf16>, vector<16x128xf32> -> vector<16x128xf32>
    %129 = vector.extract_strided_slice %53 {offsets = [16, 0], sizes = [16, 128], strides = [1, 1]} : vector<32x128xbf16> to vector<16x128xbf16>
    %130 = vector.extract_strided_slice %60 {offsets = [16, 0], sizes = [16, 128], strides = [1, 1]} : vector<32x128xbf16> to vector<16x128xbf16>
    %131 = vector.extract_strided_slice %67 {offsets = [16, 0], sizes = [16, 128], strides = [1, 1]} : vector<32x128xbf16> to vector<16x128xbf16>
    %cst_63 = arith.constant dense<0.000000e+00> : vector<16x16xf32>
    %132 = tpu.matmul %129, %130, %cst_63 {dimension_numbers = #tpu.dot_dimension_numbers<[1], [1], [0], [0], [0, 0, 1, 0], [], []>} : vector<16x128xbf16>, vector<16x128xbf16>, vector<16x16xf32> -> vector<16x16xf32>
    %cst_64 = arith.constant dense<0xFF800000> : vector<16xf32>
    %133 = vector.multi_reduction <maximumf>, %132, %cst_64 [1] : vector<16x16xf32> to vector<16xf32>
    %134 = vector.shape_cast %133 : vector<16xf32> to vector<16x1xf32>
    %135 = vector.broadcast %134 : vector<16x1xf32> to vector<16x16xf32>
    %136 = arith.subf %132, %135 : vector<16x16xf32>
    %137 = math.exp %136 : vector<16x16xf32>
    %cst_65 = arith.constant dense<0.000000e+00> : vector<16xf32>
    %138 = vector.multi_reduction <add>, %137, %cst_65 [1] : vector<16x16xf32> to vector<16xf32>
    %139 = vector.shape_cast %138 : vector<16xf32> to vector<16x1xf32>
    %140 = tpu.reciprocal %139 {approx = true} : vector<16x1xf32> -> vector<16x1xf32>
    %141 = vector.broadcast %140 : vector<16x1xf32> to vector<16x16xf32>
    %142 = arith.mulf %137, %141 : vector<16x16xf32>
    %143 = arith.truncf %142 : vector<16x16xf32> to vector<16x16xbf16>
    %cst_66 = arith.constant dense<0.000000e+00> : vector<16x128xf32>
    %144 = tpu.matmul %143, %131, %cst_66 {dimension_numbers = #tpu.dot_dimension_numbers<[1], [0], [0], [1], [0, 0, 1, 1], [], []>} : vector<16x16xbf16>, vector<16x128xbf16>, vector<16x128xf32> -> vector<16x128xf32>
    %145 = arith.truncf %144 : vector<16x128xf32> to vector<16x128xbf16>
    %c8_67 = arith.constant 8 : index
    %c0_68 = arith.constant 0 : index
    %c0_69 = arith.constant 0 : index
    %146 = vector.load %arg1[%c8_67, %c0_68, %c0_69] : memref<12x128x128xbf16, #tpu.memory_space<vmem>>, vector<1x128x128xbf16>
    %147 = vector.shape_cast %146 : vector<1x128x128xbf16> to vector<128x128xbf16>
    %cst_70 = arith.constant dense<0.000000e+00> : vector<16x128xf32>
    %148 = tpu.matmul %145, %147, %cst_70 {dimension_numbers = #tpu.dot_dimension_numbers<[1], [0], [0], [1], [0, 0, 1, 1], [], []>} : vector<16x128xbf16>, vector<128x128xbf16>, vector<16x128xf32> -> vector<16x128xf32>
    %149 = arith.addf %128, %148 : vector<16x128xf32>
    %150 = tpu.concatenate %108, %149 in 0 : vector<16x128xf32>, vector<16x128xf32> -> vector<32x128xf32>
    %151 = arith.addf %6, %150 : vector<32x128xf32>
    %c7_71 = arith.constant 7 : index
    %c0_72 = arith.constant 0 : index
    %152 = vector.load %arg2[%c7_71, %c0_72] : memref<11x128xf32, #tpu.memory_space<vmem>>, vector<1x128xf32>
    %153 = vector.broadcast %152 : vector<1x128xf32> to vector<32x128xf32>
    %154 = arith.addf %151, %153 : vector<32x128xf32>
    %cst_73 = arith.constant dense<0.000000e+00> : vector<32xf32>
    %155 = vector.multi_reduction <add>, %154, %cst_73 [1] : vector<32x128xf32> to vector<32xf32>
    %156 = vector.shape_cast %155 : vector<32xf32> to vector<32x1xf32>
    %157 = arith.mulf %154, %154 : vector<32x128xf32>
    %cst_74 = arith.constant dense<0.000000e+00> : vector<32xf32>
    %158 = vector.multi_reduction <add>, %157, %cst_74 [1] : vector<32x128xf32> to vector<32xf32>
    %159 = vector.shape_cast %158 : vector<32xf32> to vector<32x1xf32>
    %cst_75 = arith.constant 3.125000e-02 : f32
    %160 = vector.broadcast %cst_75 : f32 to vector<32x1xf32>
    %161 = arith.mulf %156, %160 : vector<32x1xf32>
    %cst_76 = arith.constant 3.125000e-02 : f32
    %162 = vector.broadcast %cst_76 : f32 to vector<32x1xf32>
    %163 = arith.mulf %159, %162 : vector<32x1xf32>
    %164 = arith.mulf %161, %161 : vector<32x1xf32>
    %165 = arith.subf %163, %164 : vector<32x1xf32>
    %166 = vector.broadcast %161 : vector<32x1xf32> to vector<32x128xf32>
    %167 = arith.subf %154, %166 : vector<32x128xf32>
    %cst_77 = arith.constant 9.99999974E-6 : f32
    %168 = vector.broadcast %cst_77 : f32 to vector<32x1xf32>
    %169 = arith.addf %165, %168 : vector<32x1xf32>
    %170 = math.rsqrt %169 : vector<32x1xf32>
    %171 = vector.broadcast %170 : vector<32x1xf32> to vector<32x128xf32>
    %172 = arith.mulf %167, %171 : vector<32x128xf32>
    %173 = arith.truncf %172 : vector<32x128xf32> to vector<32x128xbf16>
    %c9 = arith.constant 9 : index
    %c0_78 = arith.constant 0 : index
    %c0_79 = arith.constant 0 : index
    %174 = vector.load %arg1[%c9, %c0_78, %c0_79] : memref<12x128x128xbf16, #tpu.memory_space<vmem>>, vector<1x128x128xbf16>
    %175 = vector.shape_cast %174 : vector<1x128x128xbf16> to vector<128x128xbf16>
    %cst_80 = arith.constant dense<0.000000e+00> : vector<32x128xf32>
    %176 = tpu.matmul %173, %175, %cst_80 {dimension_numbers = #tpu.dot_dimension_numbers<[1], [0], [0], [1], [0, 0, 1, 1], [], []>} : vector<32x128xbf16>, vector<128x128xbf16>, vector<32x128xf32> -> vector<32x128xf32>
    %c8_81 = arith.constant 8 : index
    %c0_82 = arith.constant 0 : index
    %177 = vector.load %arg2[%c8_81, %c0_82] : memref<11x128xf32, #tpu.memory_space<vmem>>, vector<1x128xf32>
    %178 = vector.broadcast %177 : vector<1x128xf32> to vector<32x128xf32>
    %179 = arith.addf %176, %178 : vector<32x128xf32>
    %180 = arith.mulf %179, %179 : vector<32x128xf32>
    %181 = arith.mulf %179, %180 : vector<32x128xf32>
    %cst_83 = arith.constant 4.471500e-02 : f32
    %182 = vector.broadcast %cst_83 : f32 to vector<32x128xf32>
    %183 = arith.mulf %182, %181 : vector<32x128xf32>
    %184 = arith.addf %179, %183 : vector<32x128xf32>
    %cst_84 = arith.constant 0.797884583 : f32
    %185 = vector.broadcast %cst_84 : f32 to vector<32x128xf32>
    %186 = arith.mulf %185, %184 : vector<32x128xf32>
    %187 = math.tanh %186 : vector<32x128xf32>
    %cst_85 = arith.constant 1.000000e+00 : f32
    %188 = vector.broadcast %cst_85 : f32 to vector<32x128xf32>
    %189 = arith.addf %188, %187 : vector<32x128xf32>
    %cst_86 = arith.constant 5.000000e-01 : f32
    %190 = vector.broadcast %cst_86 : f32 to vector<32x128xf32>
    %191 = arith.mulf %190, %189 : vector<32x128xf32>
    %192 = arith.mulf %179, %191 : vector<32x128xf32>
    %193 = arith.truncf %192 : vector<32x128xf32> to vector<32x128xbf16>
    %c10 = arith.constant 10 : index
    %c0_87 = arith.constant 0 : index
    %c0_88 = arith.constant 0 : index
    %194 = vector.load %arg1[%c10, %c0_87, %c0_88] : memref<12x128x128xbf16, #tpu.memory_space<vmem>>, vector<1x128x128xbf16>
    %195 = vector.shape_cast %194 : vector<1x128x128xbf16> to vector<128x128xbf16>
    %cst_89 = arith.constant dense<0.000000e+00> : vector<32x128xf32>
    %196 = tpu.matmul %193, %195, %cst_89 {dimension_numbers = #tpu.dot_dimension_numbers<[1], [0], [0], [1], [0, 0, 1, 1], [], []>} : vector<32x128xbf16>, vector<128x128xbf16>, vector<32x128xf32> -> vector<32x128xf32>
    %c9_90 = arith.constant 9 : index
    %c0_91 = arith.constant 0 : index
    %197 = vector.load %arg2[%c9_90, %c0_91] : memref<11x128xf32, #tpu.memory_space<vmem>>, vector<1x128xf32>
    %198 = vector.broadcast %197 : vector<1x128xf32> to vector<32x128xf32>
    %199 = arith.addf %196, %198 : vector<32x128xf32>
    %200 = arith.addf %154, %199 : vector<32x128xf32>
    %c0_92 = arith.constant 0 : index
    %c0_93 = arith.constant 0 : index
    %201 = vector.load %arg4[%c0_92, %c0_93] : memref<32x128xf32, #tpu.memory_space<vmem>>, vector<32x128xf32>
    tpu.vector_store %arg4[%c0_92, %c0_93], %200 {strides = array<i32>} : memref<32x128xf32, #tpu.memory_space<vmem>>, vector<32x128xf32>,
    %cst_94 = arith.constant dense<0.000000e+00> : vector<32xf32>
    %202 = vector.multi_reduction <add>, %200, %cst_94 [1] : vector<32x128xf32> to vector<32xf32>
    %203 = vector.shape_cast %202 : vector<32xf32> to vector<32x1xf32>
    %204 = arith.mulf %200, %200 : vector<32x128xf32>
    %cst_95 = arith.constant dense<0.000000e+00> : vector<32xf32>
    %205 = vector.multi_reduction <add>, %204, %cst_95 [1] : vector<32x128xf32> to vector<32xf32>
    %206 = vector.shape_cast %205 : vector<32xf32> to vector<32x1xf32>
    %cst_96 = arith.constant 3.125000e-02 : f32
    %207 = vector.broadcast %cst_96 : f32 to vector<32x1xf32>
    %208 = arith.mulf %203, %207 : vector<32x1xf32>
    %cst_97 = arith.constant 3.125000e-02 : f32
    %209 = vector.broadcast %cst_97 : f32 to vector<32x1xf32>
    %210 = arith.mulf %206, %209 : vector<32x1xf32>
    %211 = arith.mulf %208, %208 : vector<32x1xf32>
    %212 = arith.subf %210, %211 : vector<32x1xf32>
    %213 = vector.broadcast %208 : vector<32x1xf32> to vector<32x128xf32>
    %214 = arith.subf %200, %213 : vector<32x128xf32>
    %cst_98 = arith.constant 9.99999974E-6 : f32
    %215 = vector.broadcast %cst_98 : f32 to vector<32x1xf32>
    %216 = arith.addf %212, %215 : vector<32x1xf32>
    %217 = math.rsqrt %216 : vector<32x1xf32>
    %218 = vector.broadcast %217 : vector<32x1xf32> to vector<32x128xf32>
    %219 = arith.mulf %214, %218 : vector<32x128xf32>
    %220 = arith.truncf %219 : vector<32x128xf32> to vector<32x128xbf16>
    %c11 = arith.constant 11 : index
    %c0_99 = arith.constant 0 : index
    %c0_100 = arith.constant 0 : index
    %221 = vector.load %arg1[%c11, %c0_99, %c0_100] : memref<12x128x128xbf16, #tpu.memory_space<vmem>>, vector<1x128x128xbf16>
    %222 = vector.shape_cast %221 : vector<1x128x128xbf16> to vector<128x128xbf16>
    %cst_101 = arith.constant dense<0.000000e+00> : vector<32x128xf32>
    %223 = tpu.matmul %220, %222, %cst_101 {dimension_numbers = #tpu.dot_dimension_numbers<[1], [0], [0], [1], [0, 0, 1, 1], [], []>} : vector<32x128xbf16>, vector<128x128xbf16>, vector<32x128xf32> -> vector<32x128xf32>
    %c10_102 = arith.constant 10 : index
    %c0_103 = arith.constant 0 : index
    %224 = vector.load %arg2[%c10_102, %c0_103] : memref<11x128xf32, #tpu.memory_space<vmem>>, vector<1x128xf32>
    %225 = vector.broadcast %224 : vector<1x128xf32> to vector<32x128xf32>
    %226 = arith.addf %223, %225 : vector<32x128xf32>
    %c0_104 = arith.constant 0 : index
    %c0_105 = arith.constant 0 : index
    %227 = vector.load %arg3[%c0_104, %c0_105] : memref<32x128xf32, #tpu.memory_space<vmem>>, vector<32x128xf32>
    tpu.vector_store %arg3[%c0_104, %c0_105], %226 {strides = array<i32>} : memref<32x128xf32, #tpu.memory_space<vmem>>, vector<32x128xf32>,
    return
  }
}

</mosaic_0001>

<llo_original>
// kernel: multimodel_seg_forward.1
$region0: #{multimodel_seg_forward.1}
  #allocation0 [shape = 'u32[]', space=smem, size = 0x4, offset = 0x4, fixed_abs, tag = 'smem constant byte address 0x4 - core index']
  #allocation1 [shape = 'u32[72,128]{1,0:T(1,128)}', space=vmem, size = 0x9000, scoped, tag = 'internal scratch']
  %s0 = inlined_call_operand.vmem [shape: bf16[32,128], index: 0, kind: input, shape index: {}]
  %s1 = inlined_call_operand.vmem [shape: bf16[12,128,128], index: 1, kind: input, shape index: {}]
  %s2 = inlined_call_operand.vmem [shape: f32[11,128], index: 2, kind: input, shape index: {}]
  %s3 = inlined_call_operand.vmem [shape: f32[32,128], index: 3, kind: output, shape index: {0}]
  %s4 = inlined_call_operand.hbm [shape: f32[32,128], index: 4, kind: output, shape index: {1}]
  %5 = xla_tuple %s3, %s4
  %s6 = sld [smem:[#allocation0]]
  $region30: #{multimodel_seg_forward.1} parent=0
    _
  %s8 = ssub.s32 1, %s6
  %s9 = scalar_select 0, %s8, %s6
  $region1: #{multimodel_seg_forward.1} parent=0
    #allocation2 [shape = 'u8[16384]{0}', space=vmem, size = 0x4000, scoped, tag = 'output window, operand 1, single buffered']
    #allocation3 [shape = 's32[1]{0}', space=sflag, size = 0x4, scoped, tag = 'scoped memory for multimodel_seg_forward.1']
    %10 = vsyncpa [#allocation3], 0
    // Predicated region
    $region2: #{multimodel_seg_forward.1} parent=1 // pred_check
      _
    $region3: #{multimodel_seg_forward.1} parent=1 // pred_check_branch
      %12 = sbr.rel (0) target = $region5
    $region4: #{multimodel_seg_forward.1} parent=1 // pred_region
      _
    $region5: #{multimodel_seg_forward.1} parent=1 // pred_fallthru
      _
    // Predicated region
    $region6: #{multimodel_seg_forward.1} parent=1 // pred_check
      _
    $region7: #{multimodel_seg_forward.1} parent=1 // pred_check_branch
      %14 = sbr.rel (0) target = $region9
    $region8: #{multimodel_seg_forward.1} parent=1 // pred_region
      _
    $region9: #{multimodel_seg_forward.1} parent=1 // pred_fallthru
      _
    // Predicated region
    $region10: #{multimodel_seg_forward.1} parent=1 // pred_check
      _
    $region11: #{multimodel_seg_forward.1} parent=1 // pred_check_branch
      %16 = sbr.rel (0) target = $region13
    $region12: #{multimodel_seg_forward.1} parent=1 // pred_region
      _
    $region13: #{multimodel_seg_forward.1} parent=1 // pred_fallthru
      _
    %v18 = vld [vmem:[%s0] sm:$0xf]
    %v19 = vld [vmem:[%s0 + $0x4] sm:$0xf]
    %v20 = vld [vmem:[%s0 + $0x8] sm:$0xf]
    %v21 = vld [vmem:[%s0 + $0xc] sm:$0xf]
    %v22 = vld [vmem:[%s1] sm:$0xf]
    %v23 = vld [vmem:[%s1 + $0x4] sm:$0xf]
    %v24 = vld [vmem:[%s1 + $0x8] sm:$0xf]
    %v25 = vld [vmem:[%s1 + $0xc] sm:$0xf]
    %v26 = vld [vmem:[%s1 + $0x10] sm:$0xf]
    %v27 = vld [vmem:[%s1 + $0x14] sm:$0xf]
    %v28 = vld [vmem:[%s1 + $0x18] sm:$0xf]
    %v29 = vld [vmem:[%s1 + $0x1c] sm:$0xf]
    %v30 = vld [vmem:[%s1 + $0x20] sm:$0xf]
    %v31 = vld [vmem:[%s1 + $0x24] sm:$0xf]
    %v32 = vld [vmem:[%s1 + $0x28] sm:$0xf]
    %v33 = vld [vmem:[%s1 + $0x2c] sm:$0xf]
    %v34 = vld [vmem:[%s1 + $0x30] sm:$0xf]
    %v35 = vld [vmem:[%s1 + $0x34] sm:$0xf]
    %v36 = vld [vmem:[%s1 + $0x38] sm:$0xf]
    %v37 = vld [vmem:[%s1 + $0x3c] sm:$0xf]
    %v38 = vld [vmem:[%s2] sm:$0x1]
    %v39 = vperm.slane %v38, 0
    %v44 = vunpack.c.l.b16 %v18
    %v45 = vunpack.c.l.b16 %v19
    %v46 = vunpack.c.l.b16 %v20
    %v47 = vunpack.c.l.b16 %v21
    %v48 = vpack.c.b16 %v45, %v44
    %v49 = vpack.c.b16 %v47, %v46
    %v68 = vunpack.c.l.b16 %v22
    %v69 = vunpack.c.l.b16 %v23
    %v70 = vunpack.c.l.b16 %v24
    %v71 = vunpack.c.l.b16 %v25
    %v72 = vunpack.c.l.b16 %v26
    %v73 = vunpack.c.l.b16 %v27
    %v74 = vunpack.c.l.b16 %v28
    %v75 = vunpack.c.l.b16 %v29
    %v76 = vunpack.c.l.b16 %v30
    %v77 = vunpack.c.l.b16 %v31
    %v78 = vunpack.c.l.b16 %v32
    %v79 = vunpack.c.l.b16 %v33
    %v80 = vunpack.c.l.b16 %v34
    %v81 = vunpack.c.l.b16 %v35
    %v82 = vunpack.c.l.b16 %v36
    %v83 = vunpack.c.l.b16 %v37
    %v84 = vpack.c.b16 %v69, %v68
    %v85 = vpack.c.b16 %v71, %v70
    %v86 = vpack.c.b16 %v73, %v72
    %v87 = vpack.c.b16 %v75, %v74
    %v88 = vpack.c.b16 %v77, %v76
    %v89 = vpack.c.b16 %v79, %v78
    %v90 = vpack.c.b16 %v81, %v80
    %v91 = vpack.c.b16 %v83, %v82
    %100 = vmatpush.bf16.msra.mxu0 %v91
    %101 = vmatpush.bf16.msra.mxu0 %v90
    %102 = vmatpush.bf16.msra.mxu0 %v89
    %103 = vmatpush.bf16.msra.mxu0 %v88
    %104 = vmatpush.bf16.msra.mxu0 %v87
    %105 = vmatpush.bf16.msra.mxu0 %v86
    %106 = vmatpush.bf16.msra.mxu0 %v85
    %107 = vmatpush.bf16.msra.mxu0 %v84
    %108 = vmatmul.bf16.gmra.mxu0 %v48
    %v109 = vpop.f32.mrf.mxu0
    %v110 = vadd.f32 %v39, %v109
    %v111 = vpop.f32.mrf.mxu0
    %v112 = vadd.f32 %v39, %v111
    %113 = vmatmul.bf16.gmra.mxu0 %v49
    %v114 = vpop.f32.mrf.mxu0
    %v115 = vadd.f32 %v39, %v114
    %v116 = vpop.f32.mrf.mxu0
    %v117 = vadd.f32 %v39, %v116
    %118 = vdwg.mxu0
    %119 = vadd.xlane.f32.xlu0 %v110
    %v120 = vpop.xlane.xlu0 %119
    %121 = vadd.xlane.f32.xlu0 %v112
    %v122 = vpop.xlane.xlu0 %121
    %123 = vadd.xlane.f32.xlu0 %v115
    %v124 = vpop.xlane.xlu0 %123
    %125 = vadd.xlane.f32.xlu0 %v117
    %v126 = vpop.xlane.xlu0 %125
    %v127 = vmul.f32 %v110, %v110
    %v128 = vmul.f32 %v112, %v112
    %v129 = vmul.f32 %v115, %v115
    %v130 = vmul.f32 %v117, %v117
    %131 = vadd.xlane.f32.xlu0 %v127
    %v132 = vpop.xlane.xlu0 %131
    %133 = vadd.xlane.f32.xlu0 %v128
    %v134 = vpop.xlane.xlu0 %133
    %135 = vadd.xlane.f32.xlu0 %v129
    %v136 = vpop.xlane.xlu0 %135
    %137 = vadd.xlane.f32.xlu0 %v130
    %v138 = vpop.xlane.xlu0 %137
    %v139 = vmul.f32 %v120, 0.03125
    %v140 = vmul.f32 %v122, 0.03125
    %v141 = vmul.f32 %v124, 0.03125
    %v142 = vmul.f32 %v126, 0.03125
    %v143 = vmul.f32 %v132, 0.03125
    %v144 = vmul.f32 %v134, 0.03125
    %v145 = vmul.f32 %v136, 0.03125
    %v146 = vmul.f32 %v138, 0.03125
    %v147 = vmul.f32 %v139, %v139
    %v148 = vmul.f32 %v140, %v140
    %v149 = vmul.f32 %v141, %v141
    %v150 = vmul.f32 %v142, %v142
    %v151 = vsub.f32 %v143, %v147
    %v152 = vsub.f32 %v144, %v148
    %v153 = vsub.f32 %v145, %v149
    %v154 = vsub.f32 %v146, %v150
    %v155 = vsub.f32 %v110, %v139
    %v156 = vsub.f32 %v112, %v140
    %v157 = vsub.f32 %v115, %v141
    %v158 = vsub.f32 %v117, %v142
    %v159 = vadd.f32 %v151, 1e-05
    %v160 = vadd.f32 %v152, 1e-05
    %v161 = vadd.f32 %v153, 1e-05
    %v162 = vadd.f32 %v154, 1e-05
    %v163 = vrsqrt.pop %v159
    %v164 = vmul.f32 %v163, %v159
    %v165 = vmul.f32 %v164, %v163
    %v166 = vmul.f32 0.5, %v165
    %v167 = vsub.f32 1.5, %v166
    %v168 = vmul.f32 %v163, %v167
    %vm169 = vweird.f32 %v159
    %vm170 = vweird.f32 %v163
    %vm171 = vmor %vm169, %vm170
    %v172 = vsel %vm171, %v163, %v168
    %v173 = vrsqrt.pop %v160
    %v174 = vmul.f32 %v173, %v160
    %v175 = vmul.f32 %v174, %v173
    %v176 = vmul.f32 0.5, %v175
    %v177 = vsub.f32 1.5, %v176
    %v178 = vmul.f32 %v173, %v177
    %vm179 = vweird.f32 %v160
    %vm180 = vweird.f32 %v173
    %vm181 = vmor %vm179, %vm180
    %v182 = vsel %vm181, %v173, %v178
    %v183 = vrsqrt.pop %v161
    %v184 = vmul.f32 %v183, %v161
    %v185 = vmul.f32 %v184, %v183
    %v186 = vmul.f32 0.5, %v185
    %v187 = vsub.f32 1.5, %v186
    %v188 = vmul.f32 %v183, %v187
    %vm189 = vweird.f32 %v161
    %vm190 = vweird.f32 %v183
    %vm191 = vmor %vm189, %vm190
    %v192 = vsel %vm191, %v183, %v188
    %v193 = vrsqrt.pop %v162
    %v194 = vmul.f32 %v193, %v162
    %v195 = vmul.f32 %v194, %v193
    %v196 = vmul.f32 0.5, %v195
    %v197 = vsub.f32 1.5, %v196
    %v198 = vmul.f32 %v193, %v197
    %vm199 = vweird.f32 %v162
    %vm200 = vweird.f32 %v193
    %vm201 = vmor %vm199, %vm200
    %v202 = vsel %vm201, %v193, %v198
    %v203 = vmul.f32 %v155, %v172
    %v204 = vmul.f32 %v156, %v182
    %v205 = vmul.f32 %v157, %v192
    %v206 = vmul.f32 %v158, %v202
    %v207 = vpack.c.bf16 %v204, %v203
    %v208 = vpack.c.bf16 %v206, %v205
    %s209 = scalar_lea.vmem %s1, 64
    %v210 = vld [vmem:[%s209] sm:$0xf]
    %v211 = vld [vmem:[%s209 + $0x4] sm:$0xf]
    %v212 = vld [vmem:[%s209 + $0x8] sm:$0xf]
    %v213 = vld [vmem:[%s209 + $0xc] sm:$0xf]
    %v214 = vld [vmem:[%s209 + $0x10] sm:$0xf]
    %v215 = vld [vmem:[%s209 + $0x14] sm:$0xf]
    %v216 = vld [vmem:[%s209 + $0x18] sm:$0xf]
    %v217 = vld [vmem:[%s209 + $0x1c] sm:$0xf]
    %v218 = vld [vmem:[%s209 + $0x20] sm:$0xf]
    %v219 = vld [vmem:[%s209 + $0x24] sm:$0xf]
    %v220 = vld [vmem:[%s209 + $0x28] sm:$0xf]
    %v221 = vld [vmem:[%s209 + $0x2c] sm:$0xf]
    %v222 = vld [vmem:[%s209 + $0x30] sm:$0xf]
    %v223 = vld [vmem:[%s209 + $0x34] sm:$0xf]
    %v224 = vld [vmem:[%s209 + $0x38] sm:$0xf]
    %v225 = vld [vmem:[%s209 + $0x3c] sm:$0xf]
    %v226 = vld [vmem:[%s2 + $0x1] sm:$0x1]
    %v227 = vperm.slane %v226, 0
    %v244 = vunpack.c.l.b16 %v210
    %v245 = vunpack.c.l.b16 %v211
    %v246 = vunpack.c.l.b16 %v212
    %v247 = vunpack.c.l.b16 %v213
    %v248 = vunpack.c.l.b16 %v214
    %v249 = vunpack.c.l.b16 %v215
    %v250 = vunpack.c.l.b16 %v216
    %v251 = vunpack.c.l.b16 %v217
    %v252 = vunpack.c.l.b16 %v218
    %v253 = vunpack.c.l.b16 %v219
    %v254 = vunpack.c.l.b16 %v220
    %v255 = vunpack.c.l.b16 %v221
    %v256 = vunpack.c.l.b16 %v222
    %v257 = vunpack.c.l.b16 %v223
    %v258 = vunpack.c.l.b16 %v224
    %v259 = vunpack.c.l.b16 %v225
    %v260 = vpack.c.b16 %v245, %v244
    %v261 = vpack.c.b16 %v247, %v246
    %v262 = vpack.c.b16 %v249, %v248
    %v263 = vpack.c.b16 %v251, %v250
    %v264 = vpack.c.b16 %v253, %v252
    %v265 = vpack.c.b16 %v255, %v254
    %v266 = vpack.c.b16 %v257, %v256
    %v267 = vpack.c.b16 %v259, %v258
    %276 = vmatpush.bf16.msra.mxu0 %v267
    %277 = vmatpush.bf16.msra.mxu0 %v266
    %278 = vmatpush.bf16.msra.mxu0 %v265
    %279 = vmatpush.bf16.msra.mxu0 %v264
    %280 = vmatpush.bf16.msra.mxu0 %v263
    %281 = vmatpush.bf16.msra.mxu0 %v262
    %282 = vmatpush.bf16.msra.mxu0 %v261
    %283 = vmatpush.bf16.msra.mxu0 %v260
    %284 = vmatmul.bf16.gmra.mxu0 %v207
    %v285 = vpop.f32.mrf.mxu0
    %v286 = vadd.f32 %v227, %v285
    %v287 = vpop.f32.mrf.mxu0
    %v288 = vadd.f32 %v227, %v287
    %289 = vmatmul.bf16.gmra.mxu0 %v208
    %v290 = vpop.f32.mrf.mxu0
    %v291 = vadd.f32 %v227, %v290
    %v292 = vpop.f32.mrf.mxu0
    %v293 = vadd.f32 %v227, %v292
    %294 = vdwg.mxu0
    %v295 = vpack.c.bf16 %v286, %v286
    %v296 = vpack.c.bf16 %v288, %v288
    %v297 = vpack.c.bf16 %v291, %v291
    %v298 = vpack.c.bf16 %v293, %v293
    %s299 = scalar_lea.vmem %s1, 128
    %v300 = vld [vmem:[%s299] sm:$0xf]
    %v301 = vld [vmem:[%s299 + $0x4] sm:$0xf]
    %v302 = vld [vmem:[%s299 + $0x8] sm:$0xf]
    %v303 = vld [vmem:[%s299 + $0xc] sm:$0xf]
    %v304 = vld [vmem:[%s299 + $0x10] sm:$0xf]
    %v305 = vld [vmem:[%s299 + $0x14] sm:$0xf]
    %v306 = vld [vmem:[%s299 + $0x18] sm:$0xf]
    %v307 = vld [vmem:[%s299 + $0x1c] sm:$0xf]
    %v308 = vld [vmem:[%s299 + $0x20] sm:$0xf]
    %v309 = vld [vmem:[%s299 + $0x24] sm:$0xf]
    %v310 = vld [vmem:[%s299 + $0x28] sm:$0xf]
    %v311 = vld [vmem:[%s299 + $0x2c] sm:$0xf]
    %v312 = vld [vmem:[%s299 + $0x30] sm:$0xf]
    %v313 = vld [vmem:[%s299 + $0x34] sm:$0xf]
    %v314 = vld [vmem:[%s299 + $0x38] sm:$0xf]
    %v315 = vld [vmem:[%s299 + $0x3c] sm:$0xf]
    %v316 = vld [vmem:[%s2 + $0x2] sm:$0x1]
    %v317 = vperm.slane %v316, 0
    %v334 = vunpack.c.l.b16 %v300
    %v335 = vunpack.c.l.b16 %v301
    %v336 = vunpack.c.l.b16 %v302
    %v337 = vunpack.c.l.b16 %v303
    %v338 = vunpack.c.l.b16 %v304
    %v339 = vunpack.c.l.b16 %v305
    %v340 = vunpack.c.l.b16 %v306
    %v341 = vunpack.c.l.b16 %v307
    %v342 = vunpack.c.l.b16 %v308
    %v343 = vunpack.c.l.b16 %v309
    %v344 = vunpack.c.l.b16 %v310
    %v345 = vunpack.c.l.b16 %v311
    %v346 = vunpack.c.l.b16 %v312
    %v347 = vunpack.c.l.b16 %v313
    %v348 = vunpack.c.l.b16 %v314
    %v349 = vunpack.c.l.b16 %v315
    %v350 = vpack.c.b16 %v335, %v334
    %v351 = vpack.c.b16 %v337, %v336
    %v352 = vpack.c.b16 %v339, %v338
    %v353 = vpack.c.b16 %v341, %v340
    %v354 = vpack.c.b16 %v343, %v342
    %v355 = vpack.c.b16 %v345, %v344
    %v356 = vpack.c.b16 %v347, %v346
    %v357 = vpack.c.b16 %v349, %v348
    %366 = vmatpush.bf16.msra.mxu0 %v357
    %367 = vmatpush.bf16.msra.mxu0 %v356
    %368 = vmatpush.bf16.msra.mxu0 %v355
    %369 = vmatpush.bf16.msra.mxu0 %v354
    %370 = vmatpush.bf16.msra.mxu0 %v353
    %371 = vmatpush.bf16.msra.mxu0 %v352
    %372 = vmatpush.bf16.msra.mxu0 %v351
    %373 = vmatpush.bf16.msra.mxu0 %v350
    %374 = vmatmul.bf16.gmra.mxu0 %v207
    %v375 = vpop.f32.mrf.mxu0
    %v376 = vadd.f32 %v317, %v375
    %v377 = vpop.f32.mrf.mxu0
    %v378 = vadd.f32 %v317, %v377
    %379 = vmatmul.bf16.gmra.mxu0 %v208
    %v380 = vpop.f32.mrf.mxu0
    %v381 = vadd.f32 %v317, %v380
    %v382 = vpop.f32.mrf.mxu0
    %v383 = vadd.f32 %v317, %v382
    %384 = vdwg.mxu0
    %v385 = vpack.c.bf16 %v376, %v376
    %v386 = vpack.c.bf16 %v378, %v378
    %v387 = vpack.c.bf16 %v381, %v381
    %v388 = vpack.c.bf16 %v383, %v383
    %s389 = scalar_lea.vmem %s1, 192
    %v390 = vld [vmem:[%s389] sm:$0xf]
    %v391 = vld [vmem:[%s389 + $0x4] sm:$0xf]
    %v392 = vld [vmem:[%s389 + $0x8] sm:$0xf]
    %v393 = vld [vmem:[%s389 + $0xc] sm:$0xf]
    %v394 = vld [vmem:[%s389 + $0x10] sm:$0xf]
    %v395 = vld [vmem:[%s389 + $0x14] sm:$0xf]
    %v396 = vld [vmem:[%s389 + $0x18] sm:$0xf]
    %v397 = vld [vmem:[%s389 + $0x1c] sm:$0xf]
    %v398 = vld [vmem:[%s389 + $0x20] sm:$0xf]
    %v399 = vld [vmem:[%s389 + $0x24] sm:$0xf]
    %v400 = vld [vmem:[%s389 + $0x28] sm:$0xf]
    %v401 = vld [vmem:[%s389 + $0x2c] sm:$0xf]
    %v402 = vld [vmem:[%s389 + $0x30] sm:$0xf]
    %v403 = vld [vmem:[%s389 + $0x34] sm:$0xf]
    %v404 = vld [vmem:[%s389 + $0x38] sm:$0xf]
    %v405 = vld [vmem:[%s389 + $0x3c] sm:$0xf]
    %v406 = vld [vmem:[%s2 + $0x3] sm:$0x1]
    %v407 = vperm.slane %v406, 0
    %v424 = vunpack.c.l.b16 %v390
    %v425 = vunpack.c.l.b16 %v391
    %v426 = vunpack.c.l.b16 %v392
    %v427 = vunpack.c.l.b16 %v393
    %v428 = vunpack.c.l.b16 %v394
    %v429 = vunpack.c.l.b16 %v395
    %v430 = vunpack.c.l.b16 %v396
    %v431 = vunpack.c.l.b16 %v397
    %v432 = vunpack.c.l.b16 %v398
    %v433 = vunpack.c.l.b16 %v399
    %v434 = vunpack.c.l.b16 %v400
    %v435 = vunpack.c.l.b16 %v401
    %v436 = vunpack.c.l.b16 %v402
    %v437 = vunpack.c.l.b16 %v403
    %v438 = vunpack.c.l.b16 %v404
    %v439 = vunpack.c.l.b16 %v405
    %v440 = vpack.c.b16 %v425, %v424
    %v441 = vpack.c.b16 %v427, %v426
    %v442 = vpack.c.b16 %v429, %v428
    %v443 = vpack.c.b16 %v431, %v430
    %v444 = vpack.c.b16 %v433, %v432
    %v445 = vpack.c.b16 %v435, %v434
    %v446 = vpack.c.b16 %v437, %v436
    %v447 = vpack.c.b16 %v439, %v438
    %456 = vmatpush.bf16.msra.mxu0 %v447
    %457 = vmatpush.bf16.msra.mxu0 %v446
    %458 = vmatpush.bf16.msra.mxu0 %v445
    %459 = vmatpush.bf16.msra.mxu0 %v444
    %460 = vmatpush.bf16.msra.mxu0 %v443
    %461 = vmatpush.bf16.msra.mxu0 %v442
    %462 = vmatpush.bf16.msra.mxu0 %v441
    %463 = vmatpush.bf16.msra.mxu0 %v440
    %464 = vmatmul.bf16.gmra.mxu0 %v207
    %v465 = vpop.f32.mrf.mxu0
    %v466 = vadd.f32 %v407, %v465
    %v467 = vpop.f32.mrf.mxu0
    %v468 = vadd.f32 %v407, %v467
    %469 = vmatmul.bf16.gmra.mxu0 %v208
    %v470 = vpop.f32.mrf.mxu0
    %v471 = vadd.f32 %v407, %v470
    %v472 = vpop.f32.mrf.mxu0
    %v473 = vadd.f32 %v407, %v472
    %474 = vdwg.mxu0
    %v475 = vpack.c.bf16 %v466, %v466
    %v476 = vpack.c.bf16 %v468, %v468
    %v477 = vpack.c.bf16 %v471, %v471
    %v478 = vpack.c.bf16 %v473, %v473
    %s479 = scalar_lea.vmem %s1, 256
    %v480 = vld [vmem:[%s479] sm:$0xf]
    %v481 = vld [vmem:[%s479 + $0x4] sm:$0xf]
    %v482 = vld [vmem:[%s479 + $0x8] sm:$0xf]
    %v483 = vld [vmem:[%s479 + $0xc] sm:$0xf]
    %v484 = vld [vmem:[%s479 + $0x10] sm:$0xf]
    %v485 = vld [vmem:[%s479 + $0x14] sm:$0xf]
    %v486 = vld [vmem:[%s479 + $0x18] sm:$0xf]
    %v487 = vld [vmem:[%s479 + $0x1c] sm:$0xf]
    %v488 = vld [vmem:[%s479 + $0x20] sm:$0xf]
    %v489 = vld [vmem:[%s479 + $0x24] sm:$0xf]
    %v490 = vld [vmem:[%s479 + $0x28] sm:$0xf]
    %v491 = vld [vmem:[%s479 + $0x2c] sm:$0xf]
    %v492 = vld [vmem:[%s479 + $0x30] sm:$0xf]
    %v493 = vld [vmem:[%s479 + $0x34] sm:$0xf]
    %v494 = vld [vmem:[%s479 + $0x38] sm:$0xf]
    %v495 = vld [vmem:[%s479 + $0x3c] sm:$0xf]
    %v496 = vld [vmem:[%s2 + $0x4] sm:$0x1]
    %v497 = vperm.slane %v496, 0
    %v514 = vunpack.c.l.b16 %v480
    %v515 = vunpack.c.l.b16 %v481
    %v516 = vunpack.c.l.b16 %v482
    %v517 = vunpack.c.l.b16 %v483
    %v518 = vunpack.c.l.b16 %v484
    %v519 = vunpack.c.l.b16 %v485
    %v520 = vunpack.c.l.b16 %v486
    %v521 = vunpack.c.l.b16 %v487
    %v522 = vunpack.c.l.b16 %v488
    %v523 = vunpack.c.l.b16 %v489
    %v524 = vunpack.c.l.b16 %v490
    %v525 = vunpack.c.l.b16 %v491
    %v526 = vunpack.c.l.b16 %v492
    %v527 = vunpack.c.l.b16 %v493
    %v528 = vunpack.c.l.b16 %v494
    %v529 = vunpack.c.l.b16 %v495
    %v530 = vpack.c.b16 %v515, %v514
    %v531 = vpack.c.b16 %v517, %v516
    %v532 = vpack.c.b16 %v519, %v518
    %v533 = vpack.c.b16 %v521, %v520
    %v534 = vpack.c.b16 %v523, %v522
    %v535 = vpack.c.b16 %v525, %v524
    %v536 = vpack.c.b16 %v527, %v526
    %v537 = vpack.c.b16 %v529, %v528
    %546 = vmatpush.bf16.msra.mxu0 %v537
    %547 = vmatpush.bf16.msra.mxu0 %v536
    %548 = vmatpush.bf16.msra.mxu0 %v535
    %549 = vmatpush.bf16.msra.mxu0 %v534
    %550 = vmatpush.bf16.msra.mxu0 %v533
    %551 = vmatpush.bf16.msra.mxu0 %v532
    %552 = vmatpush.bf16.msra.mxu0 %v531
    %553 = vmatpush.bf16.msra.mxu0 %v530
    %554 = vmatmul.bf16.gmra.mxu0 %v207
    %v555 = vpop.f32.mrf.mxu0
    %v556 = vadd.f32 %v497, %v555
    %v557 = vpop.f32.mrf.mxu0
    %v558 = vadd.f32 %v497, %v557
    %559 = vmatmul.bf16.gmra.mxu0 %v208
    %v560 = vpop.f32.mrf.mxu0
    %v561 = vadd.f32 %v497, %v560
    %v562 = vpop.f32.mrf.mxu0
    %v563 = vadd.f32 %v497, %v562
    %564 = vdwg.mxu0
    %v565 = vpack.c.bf16 %v556, %v556
    %v566 = vpack.c.bf16 %v558, %v558
    %v567 = vpack.c.bf16 %v561, %v561
    %v568 = vpack.c.bf16 %v563, %v563
    %s569 = scalar_lea.vmem %s1, 320
    %v570 = vld [vmem:[%s569] sm:$0xf]
    %v571 = vld [vmem:[%s569 + $0x4] sm:$0xf]
    %v572 = vld [vmem:[%s569 + $0x8] sm:$0xf]
    %v573 = vld [vmem:[%s569 + $0xc] sm:$0xf]
    %v574 = vld [vmem:[%s569 + $0x10] sm:$0xf]
    %v575 = vld [vmem:[%s569 + $0x14] sm:$0xf]
    %v576 = vld [vmem:[%s569 + $0x18] sm:$0xf]
    %v577 = vld [vmem:[%s569 + $0x1c] sm:$0xf]
    %v578 = vld [vmem:[%s569 + $0x20] sm:$0xf]
    %v579 = vld [vmem:[%s569 + $0x24] sm:$0xf]
    %v580 = vld [vmem:[%s569 + $0x28] sm:$0xf]
    %v581 = vld [vmem:[%s569 + $0x2c] sm:$0xf]
    %v582 = vld [vmem:[%s569 + $0x30] sm:$0xf]
    %v583 = vld [vmem:[%s569 + $0x34] sm:$0xf]
    %v584 = vld [vmem:[%s569 + $0x38] sm:$0xf]
    %v585 = vld [vmem:[%s569 + $0x3c] sm:$0xf]
    %v586 = vld [vmem:[%s2 + $0x5] sm:$0x1]
    %v587 = vperm.slane %v586, 0
    %v604 = vunpack.c.l.b16 %v570
    %v605 = vunpack.c.l.b16 %v571
    %v606 = vunpack.c.l.b16 %v572
    %v607 = vunpack.c.l.b16 %v573
    %v608 = vunpack.c.l.b16 %v574
    %v609 = vunpack.c.l.b16 %v575
    %v610 = vunpack.c.l.b16 %v576
    %v611 = vunpack.c.l.b16 %v577
    %v612 = vunpack.c.l.b16 %v578
    %v613 = vunpack.c.l.b16 %v579
    %v614 = vunpack.c.l.b16 %v580
    %v615 = vunpack.c.l.b16 %v581
    %v616 = vunpack.c.l.b16 %v582
    %v617 = vunpack.c.l.b16 %v583
    %v618 = vunpack.c.l.b16 %v584
    %v619 = vunpack.c.l.b16 %v585
    %v620 = vpack.c.b16 %v605, %v604
    %v621 = vpack.c.b16 %v607, %v606
    %v622 = vpack.c.b16 %v609, %v608
    %v623 = vpack.c.b16 %v611, %v610
    %v624 = vpack.c.b16 %v613, %v612
    %v625 = vpack.c.b16 %v615, %v614
    %v626 = vpack.c.b16 %v617, %v616
    %v627 = vpack.c.b16 %v619, %v618
    %636 = vmatpush.bf16.msra.mxu0 %v627
    %637 = vmatpush.bf16.msra.mxu0 %v626
    %638 = vmatpush.bf16.msra.mxu0 %v625
    %639 = vmatpush.bf16.msra.mxu0 %v624
    %640 = vmatpush.bf16.msra.mxu0 %v623
    %641 = vmatpush.bf16.msra.mxu0 %v622
    %642 = vmatpush.bf16.msra.mxu0 %v621
    %643 = vmatpush.bf16.msra.mxu0 %v620
    %644 = vmatmul.bf16.gmra.mxu0 %v207
    %v645 = vpop.f32.mrf.mxu0
    %v646 = vadd.f32 %v587, %v645
    %v647 = vpop.f32.mrf.mxu0
    %v648 = vadd.f32 %v587, %v647
    %649 = vmatmul.bf16.gmra.mxu0 %v208
    %v650 = vpop.f32.mrf.mxu0
    %v651 = vadd.f32 %v587, %v650
    %v652 = vpop.f32.mrf.mxu0
    %v653 = vadd.f32 %v587, %v652
    %654 = vdwg.mxu0
    %v655 = vpack.c.bf16 %v646, %v646
    %v656 = vpack.c.bf16 %v648, %v648
    %v657 = vpack.c.bf16 %v651, %v651
    %v658 = vpack.c.bf16 %v653, %v653
    %s659 = scalar_lea.vmem %s1, 384
    %v660 = vld [vmem:[%s659] sm:$0xf]
    %v661 = vld [vmem:[%s659 + $0x4] sm:$0xf]
    %v662 = vld [vmem:[%s659 + $0x8] sm:$0xf]
    %v663 = vld [vmem:[%s659 + $0xc] sm:$0xf]
    %v664 = vld [vmem:[%s659 + $0x10] sm:$0xf]
    %v665 = vld [vmem:[%s659 + $0x14] sm:$0xf]
    %v666 = vld [vmem:[%s659 + $0x18] sm:$0xf]
    %v667 = vld [vmem:[%s659 + $0x1c] sm:$0xf]
    %v668 = vld [vmem:[%s659 + $0x20] sm:$0xf]
    %v669 = vld [vmem:[%s659 + $0x24] sm:$0xf]
    %v670 = vld [vmem:[%s659 + $0x28] sm:$0xf]
    %v671 = vld [vmem:[%s659 + $0x2c] sm:$0xf]
    %v672 = vld [vmem:[%s659 + $0x30] sm:$0xf]
    %v673 = vld [vmem:[%s659 + $0x34] sm:$0xf]
    %v674 = vld [vmem:[%s659 + $0x38] sm:$0xf]
    %v675 = vld [vmem:[%s659 + $0x3c] sm:$0xf]
    %v676 = vld [vmem:[%s2 + $0x6] sm:$0x1]
    %v677 = vperm.slane %v676, 0
    %v694 = vunpack.c.l.b16 %v660
    %v695 = vunpack.c.l.b16 %v661
    %v696 = vunpack.c.l.b16 %v662
    %v697 = vunpack.c.l.b16 %v663
    %v698 = vunpack.c.l.b16 %v664
    %v699 = vunpack.c.l.b16 %v665
    %v700 = vunpack.c.l.b16 %v666
    %v701 = vunpack.c.l.b16 %v667
    %v702 = vunpack.c.l.b16 %v668
    %v703 = vunpack.c.l.b16 %v669
    %v704 = vunpack.c.l.b16 %v670
    %v705 = vunpack.c.l.b16 %v671
    %v706 = vunpack.c.l.b16 %v672
    %v707 = vunpack.c.l.b16 %v673
    %v708 = vunpack.c.l.b16 %v674
    %v709 = vunpack.c.l.b16 %v675
    %v710 = vpack.c.b16 %v695, %v694
    %v711 = vpack.c.b16 %v697, %v696
    %v712 = vpack.c.b16 %v699, %v698
    %v713 = vpack.c.b16 %v701, %v700
    %v714 = vpack.c.b16 %v703, %v702
    %v715 = vpack.c.b16 %v705, %v704
    %v716 = vpack.c.b16 %v707, %v706
    %v717 = vpack.c.b16 %v709, %v708
    %726 = vmatpush.bf16.msra.mxu0 %v717
    %727 = vmatpush.bf16.msra.mxu0 %v716
    %728 = vmatpush.bf16.msra.mxu0 %v715
    %729 = vmatpush.bf16.msra.mxu0 %v714
    %730 = vmatpush.bf16.msra.mxu0 %v713
    %731 = vmatpush.bf16.msra.mxu0 %v712
    %732 = vmatpush.bf16.msra.mxu0 %v711
    %733 = vmatpush.bf16.msra.mxu0 %v710
    %734 = vmatmul.bf16.gmra.mxu0 %v207
    %v735 = vpop.f32.mrf.mxu0
    %v736 = vadd.f32 %v677, %v735
    %v737 = vpop.f32.mrf.mxu0
    %v738 = vadd.f32 %v677, %v737
    %739 = vmatmul.bf16.gmra.mxu0 %v208
    %v740 = vpop.f32.mrf.mxu0
    %v741 = vadd.f32 %v677, %v740
    %v742 = vpop.f32.mrf.mxu0
    %v743 = vadd.f32 %v677, %v742
    %744 = vdwg.mxu0
    %v745 = vpack.c.bf16 %v736, %v736
    %v746 = vpack.c.bf16 %v738, %v738
    %v747 = vpack.c.bf16 %v741, %v741
    %v748 = vpack.c.bf16 %v743, %v743
    %v751 = vunpack.c.l.b16 %v295
    %v752 = vunpack.c.l.b16 %v296
    %v753 = vpack.c.b16 %v752, %v751
    %v757 = vunpack.c.l.b16 %v385
    %v758 = vunpack.c.l.b16 %v386
    %v759 = vpack.c.b16 %v758, %v757
    %761 = vmatpush.bf16.xpose.msra.mxu0 0
    %762 = vmatpush.bf16.xpose.msra.mxu0 0
    %763 = vmatpush.bf16.xpose.msra.mxu0 0
    %764 = vmatpush.bf16.xpose.msra.mxu0 0
    %765 = vmatpush.bf16.xpose.msra.mxu0 0
    %766 = vmatpush.bf16.xpose.msra.mxu0 0
    %767 = vmatpush.bf16.xpose.msra.mxu0 0
    %768 = vmatpush.bf16.xpose.msra.mxu0 %v759
    %769 = vmatmul.bf16.gmra.mxu0 %v753
    %v770 = vpop.f32.mrf.mxu0
    %v771 = vadd.f32 0.0, %v770
    %v772 = vpop.f32.mrf.mxu0
    %v773 = vadd.f32 0.0, %v772
    %774 = vdwg.mxu0
    %vm775 = vcmask 130048
    %v776 = vsel %vm775, %v771, -inf
    %777 = vmax.xlane.f32.xlu0 %v776
    %v778 = vpop.xlane.xlu0 %777
    %v779 = vsel %vm775, %v773, -inf
    %780 = vmax.xlane.f32.xlu0 %v779
    %v781 = vpop.xlane.xlu0 %780
    %v782 = vsub.f32 %v771, %v778
    %v783 = vsub.f32 %v773, %v781
    %v784 = vmul.f32 %v782, 1.442695
    %v785 = vpow.pop %v784
    %v786 = vmul.f32 %v783, 1.442695
    %v787 = vpow.pop %v786
    %v788 = vsel %vm775, %v785, 0.0
    %789 = vadd.xlane.f32.xlu0 %v788
    %v790 = vpop.xlane.xlu0 %789
    %v791 = vsel %vm775, %v787, 0.0
    %792 = vadd.xlane.f32.xlu0 %v791
    %v793 = vpop.xlane.xlu0 %792
    %v794 = vrcp.pop %v790
    %v795 = vrcp.pop %v793
    %v796 = vmul.f32 %v785, %v794
    %v797 = vmul.f32 %v787, %v795
    %v798 = vpack.c.bf16 %v797, %v796
    %v801 = vunpack.c.l.b16 %v475
    %v802 = vunpack.c.l.b16 %v476
    %v803 = vpack.c.b16 %v802, %v801
    %v806 = vsel %vm775, %v798, 0
    %808 = vmatpush.bf16.msra.mxu0 0
    %809 = vmatpush.bf16.msra.mxu0 0
    %810 = vmatpush.bf16.msra.mxu0 0
    %811 = vmatpush.bf16.msra.mxu0 0
    %812 = vmatpush.bf16.msra.mxu0 0
    %813 = vmatpush.bf16.msra.mxu0 0
    %814 = vmatpush.bf16.msra.mxu0 0
    %815 = vmatpush.bf16.msra.mxu0 %v803
    %816 = vmatmul.bf16.gmra.mxu0 %v806
    %v817 = vpop.f32.mrf.mxu0
    %v818 = vadd.f32 0.0, %v817
    %v819 = vpop.f32.mrf.mxu0
    %v820 = vadd.f32 0.0, %v819
    %821 = vdwg.mxu0
    %v822 = vpack.c.bf16 %v820, %v818
    %s823 = scalar_lea.vmem %s1, 448
    %v824 = vld [vmem:[%s823] sm:$0xf]
    %v825 = vld [vmem:[%s823 + $0x4] sm:$0xf]
    %v826 = vld [vmem:[%s823 + $0x8] sm:$0xf]
    %v827 = vld [vmem:[%s823 + $0xc] sm:$0xf]
    %v828 = vld [vmem:[%s823 + $0x10] sm:$0xf]
    %v829 = vld [vmem:[%s823 + $0x14] sm:$0xf]
    %v830 = vld [vmem:[%s823 + $0x18] sm:$0xf]
    %v831 = vld [vmem:[%s823 + $0x1c] sm:$0xf]
    %v832 = vld [vmem:[%s823 + $0x20] sm:$0xf]
    %v833 = vld [vmem:[%s823 + $0x24] sm:$0xf]
    %v834 = vld [vmem:[%s823 + $0x28] sm:$0xf]
    %v835 = vld [vmem:[%s823 + $0x2c] sm:$0xf]
    %v836 = vld [vmem:[%s823 + $0x30] sm:$0xf]
    %v837 = vld [vmem:[%s823 + $0x34] sm:$0xf]
    %v838 = vld [vmem:[%s823 + $0x38] sm:$0xf]
    %v839 = vld [vmem:[%s823 + $0x3c] sm:$0xf]
    %v842 = vunpack.c.l.b16 %v565
    %v843 = vunpack.c.l.b16 %v566
    %v844 = vpack.c.b16 %v843, %v842
    %v848 = vunpack.c.l.b16 %v655
    %v849 = vunpack.c.l.b16 %v656
    %v850 = vpack.c.b16 %v849, %v848
    %852 = vmatpush.bf16.xpose.msra.mxu0 0
    %853 = vmatpush.bf16.xpose.msra.mxu0 0
    %854 = vmatpush.bf16.xpose.msra.mxu0 0
    %855 = vmatpush.bf16.xpose.msra.mxu0 0
    %856 = vmatpush.bf16.xpose.msra.mxu0 0
    %857 = vmatpush.bf16.xpose.msra.mxu0 0
    %858 = vmatpush.bf16.xpose.msra.mxu0 0
    %859 = vmatpush.bf16.xpose.msra.mxu0 %v850
    %860 = vmatmul.bf16.gmra.mxu0 %v844
    %v861 = vpop.f32.mrf.mxu0
    %v862 = vadd.f32 0.0, %v861
    %v863 = vpop.f32.mrf.mxu0
    %v864 = vadd.f32 0.0, %v863
    %865 = vdwg.mxu0
    %v866 = vsel %vm775, %v862, -inf
    %867 = vmax.xlane.f32.xlu0 %v866
    %v868 = vpop.xlane.xlu0 %867
    %v869 = vsel %vm775, %v864, -inf
    %870 = vmax.xlane.f32.xlu0 %v869
    %v871 = vpop.xlane.xlu0 %870
    %v872 = vsub.f32 %v862, %v868
    %v873 = vsub.f32 %v864, %v871
    %v874 = vmul.f32 %v872, 1.442695
    %v875 = vpow.pop %v874
    %v876 = vmul.f32 %v873, 1.442695
    %v877 = vpow.pop %v876
    %v878 = vsel %vm775, %v875, 0.0
    %879 = vadd.xlane.f32.xlu0 %v878
    %v880 = vpop.xlane.xlu0 %879
    %v881 = vsel %vm775, %v877, 0.0
    %882 = vadd.xlane.f32.xlu0 %v881
    %v883 = vpop.xlane.xlu0 %882
    %v884 = vrcp.pop %v880
    %v885 = vrcp.pop %v883
    %v886 = vmul.f32 %v875, %v884
    %v887 = vmul.f32 %v877, %v885
    %v888 = vpack.c.bf16 %v887, %v886
    %v891 = vunpack.c.l.b16 %v745
    %v892 = vunpack.c.l.b16 %v746
    %v893 = vpack.c.b16 %v892, %v891
    %v896 = vsel %vm775, %v888, 0
    %898 = vmatpush.bf16.msra.mxu0 0
    %899 = vmatpush.bf16.msra.mxu0 0
    %900 = vmatpush.bf16.msra.mxu0 0
    %901 = vmatpush.bf16.msra.mxu0 0
    %902 = vmatpush.bf16.msra.mxu0 0
    %903 = vmatpush.bf16.msra.mxu0 0
    %904 = vmatpush.bf16.msra.mxu0 0
    %905 = vmatpush.bf16.msra.mxu0 %v893
    %906 = vmatmul.bf16.gmra.mxu0 %v896
    %v907 = vpop.f32.mrf.mxu0
    %v908 = vadd.f32 0.0, %v907
    %v909 = vpop.f32.mrf.mxu0
    %v910 = vadd.f32 0.0, %v909
    %911 = vdwg.mxu0
    %v912 = vpack.c.bf16 %v910, %v908
    %s913 = scalar_lea.vmem %s1, 512
    %v914 = vld [vmem:[%s913] sm:$0xf]
    %v915 = vld [vmem:[%s913 + $0x4] sm:$0xf]
    %v916 = vld [vmem:[%s913 + $0x8] sm:$0xf]
    %v917 = vld [vmem:[%s913 + $0xc] sm:$0xf]
    %v918 = vld [vmem:[%s913 + $0x10] sm:$0xf]
    %v919 = vld [vmem:[%s913 + $0x14] sm:$0xf]
    %v920 = vld [vmem:[%s913 + $0x18] sm:$0xf]
    %v921 = vld [vmem:[%s913 + $0x1c] sm:$0xf]
    %v922 = vld [vmem:[%s913 + $0x20] sm:$0xf]
    %v923 = vld [vmem:[%s913 + $0x24] sm:$0xf]
    %v924 = vld [vmem:[%s913 + $0x28] sm:$0xf]
    %v925 = vld [vmem:[%s913 + $0x2c] sm:$0xf]
    %v926 = vld [vmem:[%s913 + $0x30] sm:$0xf]
    %v927 = vld [vmem:[%s913 + $0x34] sm:$0xf]
    %v928 = vld [vmem:[%s913 + $0x38] sm:$0xf]
    %v929 = vld [vmem:[%s913 + $0x3c] sm:$0xf]
    %v946 = vunpack.c.l.b16 %v914
    %v947 = vunpack.c.l.b16 %v915
    %v948 = vunpack.c.l.b16 %v916
    %v949 = vunpack.c.l.b16 %v917
    %v950 = vunpack.c.l.b16 %v918
    %v951 = vunpack.c.l.b16 %v919
    %v952 = vunpack.c.l.b16 %v920
    %v953 = vunpack.c.l.b16 %v921
    %v954 = vunpack.c.l.b16 %v922
    %v955 = vunpack.c.l.b16 %v923
    %v956 = vunpack.c.l.b16 %v924
    %v957 = vunpack.c.l.b16 %v925
    %v958 = vunpack.c.l.b16 %v926
    %v959 = vunpack.c.l.b16 %v927
    %v960 = vunpack.c.l.b16 %v928
    %v961 = vunpack.c.l.b16 %v929
    %v962 = vpack.c.b16 %v947, %v946
    %v963 = vpack.c.b16 %v949, %v948
    %v964 = vpack.c.b16 %v951, %v950
    %v965 = vpack.c.b16 %v953, %v952
    %v966 = vpack.c.b16 %v955, %v954
    %v967 = vpack.c.b16 %v957, %v956
    %v968 = vpack.c.b16 %v959, %v958
    %v969 = vpack.c.b16 %v961, %v960
    %978 = vmatpush.bf16.msra.mxu0 %v969
    %979 = vmatpush.bf16.msra.mxu0 %v968
    %980 = vmatpush.bf16.msra.mxu0 %v967
    %981 = vmatpush.bf16.msra.mxu0 %v966
    %982 = vmatpush.bf16.msra.mxu0 %v965
    %983 = vmatpush.bf16.msra.mxu0 %v964
    %984 = vmatpush.bf16.msra.mxu0 %v963
    %985 = vmatpush.bf16.msra.mxu0 %v962
    %986 = vmatmul.bf16.gmra.mxu0 %v912
    %v987 = vpop.f32.mrf.mxu0
    %v988 = vadd.f32 0.0, %v987
    %v989 = vpop.f32.mrf.mxu0
    %v990 = vadd.f32 0.0, %v989
    %991 = vdwg.mxu0
    %v1008 = vunpack.c.l.b16 %v824
    %v1009 = vunpack.c.l.b16 %v825
    %v1010 = vunpack.c.l.b16 %v826
    %v1011 = vunpack.c.l.b16 %v827
    %v1012 = vunpack.c.l.b16 %v828
    %v1013 = vunpack.c.l.b16 %v829
    %v1014 = vunpack.c.l.b16 %v830
    %v1015 = vunpack.c.l.b16 %v831
    %v1016 = vunpack.c.l.b16 %v832
    %v1017 = vunpack.c.l.b16 %v833
    %v1018 = vunpack.c.l.b16 %v834
    %v1019 = vunpack.c.l.b16 %v835
    %v1020 = vunpack.c.l.b16 %v836
    %v1021 = vunpack.c.l.b16 %v837
    %v1022 = vunpack.c.l.b16 %v838
    %v1023 = vunpack.c.l.b16 %v839
    %v1024 = vpack.c.b16 %v1009, %v1008
    %v1025 = vpack.c.b16 %v1011, %v1010
    %v1026 = vpack.c.b16 %v1013, %v1012
    %v1027 = vpack.c.b16 %v1015, %v1014
    %v1028 = vpack.c.b16 %v1017, %v1016
    %v1029 = vpack.c.b16 %v1019, %v1018
    %v1030 = vpack.c.b16 %v1021, %v1020
    %v1031 = vpack.c.b16 %v1023, %v1022
    %1040 = vmatpush.bf16.msra.mxu0 %v1031
    %1041 = vmatpush.bf16.msra.mxu0 %v1030
    %1042 = vmatpush.bf16.msra.mxu0 %v1029
    %1043 = vmatpush.bf16.msra.mxu0 %v1028
    %1044 = vmatpush.bf16.msra.mxu0 %v1027
    %1045 = vmatpush.bf16.msra.mxu0 %v1026
    %1046 = vmatpush.bf16.msra.mxu0 %v1025
    %1047 = vmatpush.bf16.msra.mxu0 %v1024
    %1048 = vmatmul.bf16.gmra.mxu0 %v822
    %v1049 = vpop.f32.mrf.mxu0
    %v1050 = vadd.f32 %v988, %v1049
    %v1051 = vpop.f32.mrf.mxu0
    %v1052 = vadd.f32 %v990, %v1051
    %1053 = vdwg.mxu0
    %v1056 = vunpack.c.l.b16 %v297
    %v1057 = vunpack.c.l.b16 %v298
    %v1058 = vpack.c.b16 %v1057, %v1056
    %v1062 = vunpack.c.l.b16 %v387
    %v1063 = vunpack.c.l.b16 %v388
    %v1064 = vpack.c.b16 %v1063, %v1062
    %1066 = vmatpush.bf16.xpose.msra.mxu0 0
    %1067 = vmatpush.bf16.xpose.msra.mxu0 0
    %1068 = vmatpush.bf16.xpose.msra.mxu0 0
    %1069 = vmatpush.bf16.xpose.msra.mxu0 0
    %1070 = vmatpush.bf16.xpose.msra.mxu0 0
    %1071 = vmatpush.bf16.xpose.msra.mxu0 0
    %1072 = vmatpush.bf16.xpose.msra.mxu0 0
    %1073 = vmatpush.bf16.xpose.msra.mxu0 %v1064
    %1074 = vmatmul.bf16.gmra.mxu0 %v1058
    %v1075 = vpop.f32.mrf.mxu0
    %v1076 = vadd.f32 0.0, %v1075
    %v1077 = vpop.f32.mrf.mxu0
    %v1078 = vadd.f32 0.0, %v1077
    %1079 = vdwg.mxu0
    %v1080 = vsel %vm775, %v1076, -inf
    %1081 = vmax.xlane.f32.xlu0 %v1080
    %v1082 = vpop.xlane.xlu0 %1081
    %v1083 = vsel %vm775, %v1078, -inf
    %1084 = vmax.xlane.f32.xlu0 %v1083
    %v1085 = vpop.xlane.xlu0 %1084
    %v1086 = vsub.f32 %v1076, %v1082
    %v1087 = vsub.f32 %v1078, %v1085
    %v1088 = vmul.f32 %v1086, 1.442695
    %v1089 = vpow.pop %v1088
    %v1090 = vmul.f32 %v1087, 1.442695
    %v1091 = vpow.pop %v1090
    %v1092 = vsel %vm775, %v1089, 0.0
    %1093 = vadd.xlane.f32.xlu0 %v1092
    %v1094 = vpop.xlane.xlu0 %1093
    %v1095 = vsel %vm775, %v1091, 0.0
    %1096 = vadd.xlane.f32.xlu0 %v1095
    %v1097 = vpop.xlane.xlu0 %1096
    %v1098 = vrcp.pop %v1094
    %v1099 = vrcp.pop %v1097
    %v1100 = vmul.f32 %v1089, %v1098
    %v1101 = vmul.f32 %v1091, %v1099
    %v1102 = vpack.c.bf16 %v1101, %v1100
    %v1105 = vunpack.c.l.b16 %v477
    %v1106 = vunpack.c.l.b16 %v478
    %v1107 = vpack.c.b16 %v1106, %v1105
    %v1110 = vsel %vm775, %v1102, 0
    %1112 = vmatpush.bf16.msra.mxu0 0
    %1113 = vmatpush.bf16.msra.mxu0 0
    %1114 = vmatpush.bf16.msra.mxu0 0
    %1115 = vmatpush.bf16.msra.mxu0 0
    %1116 = vmatpush.bf16.msra.mxu0 0
    %1117 = vmatpush.bf16.msra.mxu0 0
    %1118 = vmatpush.bf16.msra.mxu0 0
    %1119 = vmatpush.bf16.msra.mxu0 %v1107
    %1120 = vmatmul.bf16.gmra.mxu0 %v1110
    %v1121 = vpop.f32.mrf.mxu0
    %v1122 = vadd.f32 0.0, %v1121
    %v1123 = vpop.f32.mrf.mxu0
    %v1124 = vadd.f32 0.0, %v1123
    %1125 = vdwg.mxu0
    %v1126 = vpack.c.bf16 %v1124, %v1122
    %v1129 = vunpack.c.l.b16 %v567
    %v1130 = vunpack.c.l.b16 %v568
    %v1131 = vpack.c.b16 %v1130, %v1129
    %v1135 = vunpack.c.l.b16 %v657
    %v1136 = vunpack.c.l.b16 %v658
    %v1137 = vpack.c.b16 %v1136, %v1135
    %1139 = vmatpush.bf16.xpose.msra.mxu0 0
    %1140 = vmatpush.bf16.xpose.msra.mxu0 0
    %1141 = vmatpush.bf16.xpose.msra.mxu0 0
    %1142 = vmatpush.bf16.xpose.msra.mxu0 0
    %1143 = vmatpush.bf16.xpose.msra.mxu0 0
    %1144 = vmatpush.bf16.xpose.msra.mxu0 0
    %1145 = vmatpush.bf16.xpose.msra.mxu0 0
    %1146 = vmatpush.bf16.xpose.msra.mxu0 %v1137
    %1147 = vmatmul.bf16.gmra.mxu0 %v1131
    %v1148 = vpop.f32.mrf.mxu0
    %v1149 = vadd.f32 0.0, %v1148
    %v1150 = vpop.f32.mrf.mxu0
    %v1151 = vadd.f32 0.0, %v1150
    %1152 = vdwg.mxu0
    %v1153 = vsel %vm775, %v1149, -inf
    %1154 = vmax.xlane.f32.xlu0 %v1153
    %v1155 = vpop.xlane.xlu0 %1154
    %v1156 = vsel %vm775, %v1151, -inf
    %1157 = vmax.xlane.f32.xlu0 %v1156
    %v1158 = vpop.xlane.xlu0 %1157
    %v1159 = vsub.f32 %v1149, %v1155
    %v1160 = vsub.f32 %v1151, %v1158
    %v1161 = vmul.f32 %v1159, 1.442695
    %v1162 = vpow.pop %v1161
    %v1163 = vmul.f32 %v1160, 1.442695
    %v1164 = vpow.pop %v1163
    %v1165 = vsel %vm775, %v1162, 0.0
    %1166 = vadd.xlane.f32.xlu0 %v1165
    %v1167 = vpop.xlane.xlu0 %1166
    %v1168 = vsel %vm775, %v1164, 0.0
    %1169 = vadd.xlane.f32.xlu0 %v1168
    %v1170 = vpop.xlane.xlu0 %1169
    %v1171 = vrcp.pop %v1167
    %v1172 = vrcp.pop %v1170
    %v1173 = vmul.f32 %v1162, %v1171
    %v1174 = vmul.f32 %v1164, %v1172
    %v1175 = vpack.c.bf16 %v1174, %v1173
    %v1178 = vunpack.c.l.b16 %v747
    %v1179 = vunpack.c.l.b16 %v748
    %v1180 = vpack.c.b16 %v1179, %v1178
    %v1183 = vsel %vm775, %v1175, 0
    %1185 = vmatpush.bf16.msra.mxu0 0
    %1186 = vmatpush.bf16.msra.mxu0 0
    %1187 = vmatpush.bf16.msra.mxu0 0
    %1188 = vmatpush.bf16.msra.mxu0 0
    %1189 = vmatpush.bf16.msra.mxu0 0
    %1190 = vmatpush.bf16.msra.mxu0 0
    %1191 = vmatpush.bf16.msra.mxu0 0
    %1192 = vmatpush.bf16.msra.mxu0 %v1180
    %1193 = vmatmul.bf16.gmra.mxu0 %v1183
    %v1194 = vpop.f32.mrf.mxu0
    %v1195 = vadd.f32 0.0, %v1194
    %v1196 = vpop.f32.mrf.mxu0
    %v1197 = vadd.f32 0.0, %v1196
    %1198 = vdwg.mxu0
    %v1199 = vpack.c.bf16 %v1197, %v1195
    %1200 = vmatpush.bf16.msra.mxu0 %v969
    %1201 = vmatpush.bf16.msra.mxu0 %v968
    %1202 = vmatpush.bf16.msra.mxu0 %v967
    %1203 = vmatpush.bf16.msra.mxu0 %v966
    %1204 = vmatpush.bf16.msra.mxu0 %v965
    %1205 = vmatpush.bf16.msra.mxu0 %v964
    %1206 = vmatpush.bf16.msra.mxu0 %v963
    %1207 = vmatpush.bf16.msra.mxu0 %v962
    %1208 = vmatmul.bf16.gmra.mxu0 %v1199
    %v1209 = vpop.f32.mrf.mxu0
    %v1210 = vadd.f32 0.0, %v1209
    %v1211 = vpop.f32.mrf.mxu0
    %v1212 = vadd.f32 0.0, %v1211
    %1213 = vdwg.mxu0
    %1214 = vmatpush.bf16.msra.mxu0 %v1031
    %1215 = vmatpush.bf16.msra.mxu0 %v1030
    %1216 = vmatpush.bf16.msra.mxu0 %v1029
    %1217 = vmatpush.bf16.msra.mxu0 %v1028
    %1218 = vmatpush.bf16.msra.mxu0 %v1027
    %1219 = vmatpush.bf16.msra.mxu0 %v1026
    %1220 = vmatpush.bf16.msra.mxu0 %v1025
    %1221 = vmatpush.bf16.msra.mxu0 %v1024
    %1222 = vmatmul.bf16.gmra.mxu0 %v1126
    %v1223 = vpop.f32.mrf.mxu0
    %v1224 = vadd.f32 %v1210, %v1223
    %v1225 = vpop.f32.mrf.mxu0
    %v1226 = vadd.f32 %v1212, %v1225
    %1227 = vdwg.mxu0
    %v1228 = vadd.f32 %v110, %v1050
    %v1229 = vadd.f32 %v112, %v1052
    %v1230 = vadd.f32 %v115, %v1224
    %v1231 = vadd.f32 %v117, %v1226
    %v1232 = vld [vmem:[%s2 + $0x7] sm:$0x1]
    %v1233 = vperm.slane %v1232, 0
    %v1234 = vadd.f32 %v1228, %v1233
    %v1235 = vadd.f32 %v1229, %v1233
    %v1236 = vadd.f32 %v1230, %v1233
    %v1237 = vadd.f32 %v1231, %v1233
    %1238 = vadd.xlane.f32.xlu0 %v1234
    %v1239 = vpop.xlane.xlu0 %1238
    %1240 = vadd.xlane.f32.xlu0 %v1235
    %v1241 = vpop.xlane.xlu0 %1240
    %1242 = vadd.xlane.f32.xlu0 %v1236
    %v1243 = vpop.xlane.xlu0 %1242
    %1244 = vadd.xlane.f32.xlu0 %v1237
    %v1245 = vpop.xlane.xlu0 %1244
    %v1246 = vmul.f32 %v1234, %v1234
    %v1247 = vmul.f32 %v1235, %v1235
    %v1248 = vmul.f32 %v1236, %v1236
    %v1249 = vmul.f32 %v1237, %v1237
    %1250 = vadd.xlane.f32.xlu0 %v1246
    %v1251 = vpop.xlane.xlu0 %1250
    %1252 = vadd.xlane.f32.xlu0 %v1247
    %v1253 = vpop.xlane.xlu0 %1252
    %1254 = vadd.xlane.f32.xlu0 %v1248
    %v1255 = vpop.xlane.xlu0 %1254
    %1256 = vadd.xlane.f32.xlu0 %v1249
    %v1257 = vpop.xlane.xlu0 %1256
    %v1258 = vmul.f32 %v1239, 0.03125
    %v1259 = vmul.f32 %v1241, 0.03125
    %v1260 = vmul.f32 %v1243, 0.03125
    %v1261 = vmul.f32 %v1245, 0.03125
    %v1262 = vmul.f32 %v1251, 0.03125
    %v1263 = vmul.f32 %v1253, 0.03125
    %v1264 = vmul.f32 %v1255, 0.03125
    %v1265 = vmul.f32 %v1257, 0.03125
    %v1266 = vmul.f32 %v1258, %v1258
    %v1267 = vmul.f32 %v1259, %v1259
    %v1268 = vmul.f32 %v1260, %v1260
    %v1269 = vmul.f32 %v1261, %v1261
    %v1270 = vsub.f32 %v1262, %v1266
    %v1271 = vsub.f32 %v1263, %v1267
    %v1272 = vsub.f32 %v1264, %v1268
    %v1273 = vsub.f32 %v1265, %v1269
    %v1274 = vsub.f32 %v1234, %v1258
    %v1275 = vsub.f32 %v1235, %v1259
    %v1276 = vsub.f32 %v1236, %v1260
    %v1277 = vsub.f32 %v1237, %v1261
    %v1278 = vadd.f32 %v1270, 1e-05
    %v1279 = vadd.f32 %v1271, 1e-05
    %v1280 = vadd.f32 %v1272, 1e-05
    %v1281 = vadd.f32 %v1273, 1e-05
    %v1282 = vrsqrt.pop %v1278
    %v1283 = vmul.f32 %v1282, %v1278
    %v1284 = vmul.f32 %v1283, %v1282
    %v1285 = vmul.f32 0.5, %v1284
    %v1286 = vsub.f32 1.5, %v1285
    %v1287 = vmul.f32 %v1282, %v1286
    %vm1288 = vweird.f32 %v1278
    %vm1289 = vweird.f32 %v1282
    %vm1290 = vmor %vm1288, %vm1289
    %v1291 = vsel %vm1290, %v1282, %v1287
    %v1292 = vrsqrt.pop %v1279
    %v1293 = vmul.f32 %v1292, %v1279
    %v1294 = vmul.f32 %v1293, %v1292
    %v1295 = vmul.f32 0.5, %v1294
    %v1296 = vsub.f32 1.5, %v1295
    %v1297 = vmul.f32 %v1292, %v1296
    %vm1298 = vweird.f32 %v1279
    %vm1299 = vweird.f32 %v1292
    %vm1300 = vmor %vm1298, %vm1299
    %v1301 = vsel %vm1300, %v1292, %v1297
    %v1302 = vrsqrt.pop %v1280
    %v1303 = vmul.f32 %v1302, %v1280
    %v1304 = vmul.f32 %v1303, %v1302
    %v1305 = vmul.f32 0.5, %v1304
    %v1306 = vsub.f32 1.5, %v1305
    %v1307 = vmul.f32 %v1302, %v1306
    %vm1308 = vweird.f32 %v1280
    %vm1309 = vweird.f32 %v1302
    %vm1310 = vmor %vm1308, %vm1309
    %v1311 = vsel %vm1310, %v1302, %v1307
    %v1312 = vrsqrt.pop %v1281
    %v1313 = vmul.f32 %v1312, %v1281
    %v1314 = vmul.f32 %v1313, %v1312
    %v1315 = vmul.f32 0.5, %v1314
    %v1316 = vsub.f32 1.5, %v1315
    %v1317 = vmul.f32 %v1312, %v1316
    %vm1318 = vweird.f32 %v1281
    %vm1319 = vweird.f32 %v1312
    %vm1320 = vmor %vm1318, %vm1319
    %v1321 = vsel %vm1320, %v1312, %v1317
    %v1322 = vmul.f32 %v1274, %v1291
    %v1323 = vmul.f32 %v1275, %v1301
    %v1324 = vmul.f32 %v1276, %v1311
    %v1325 = vmul.f32 %v1277, %v1321
    %v1326 = vpack.c.bf16 %v1323, %v1322
    %v1327 = vpack.c.bf16 %v1325, %v1324
    %s1328 = scalar_lea.vmem %s1, 576
    %v1329 = vld [vmem:[%s1328] sm:$0xf]
    %v1330 = vld [vmem:[%s1328 + $0x4] sm:$0xf]
    %v1331 = vld [vmem:[%s1328 + $0x8] sm:$0xf]
    %v1332 = vld [vmem:[%s1328 + $0xc] sm:$0xf]
    %v1333 = vld [vmem:[%s1328 + $0x10] sm:$0xf]
    %v1334 = vld [vmem:[%s1328 + $0x14] sm:$0xf]
    %v1335 = vld [vmem:[%s1328 + $0x18] sm:$0xf]
    %v1336 = vld [vmem:[%s1328 + $0x1c] sm:$0xf]
    %v1337 = vld [vmem:[%s1328 + $0x20] sm:$0xf]
    %v1338 = vld [vmem:[%s1328 + $0x24] sm:$0xf]
    %v1339 = vld [vmem:[%s1328 + $0x28] sm:$0xf]
    %v1340 = vld [vmem:[%s1328 + $0x2c] sm:$0xf]
    %v1341 = vld [vmem:[%s1328 + $0x30] sm:$0xf]
    %v1342 = vld [vmem:[%s1328 + $0x34] sm:$0xf]
    %v1343 = vld [vmem:[%s1328 + $0x38] sm:$0xf]
    %v1344 = vld [vmem:[%s1328 + $0x3c] sm:$0xf]
    %v1345 = vld [vmem:[%s2 + $0x8] sm:$0x1]
    %v1346 = vperm.slane %v1345, 0
    %v1363 = vunpack.c.l.b16 %v1329
    %v1364 = vunpack.c.l.b16 %v1330
    %v1365 = vunpack.c.l.b16 %v1331
    %v1366 = vunpack.c.l.b16 %v1332
    %v1367 = vunpack.c.l.b16 %v1333
    %v1368 = vunpack.c.l.b16 %v1334
    %v1369 = vunpack.c.l.b16 %v1335
    %v1370 = vunpack.c.l.b16 %v1336
    %v1371 = vunpack.c.l.b16 %v1337
    %v1372 = vunpack.c.l.b16 %v1338
    %v1373 = vunpack.c.l.b16 %v1339
    %v1374 = vunpack.c.l.b16 %v1340
    %v1375 = vunpack.c.l.b16 %v1341
    %v1376 = vunpack.c.l.b16 %v1342
    %v1377 = vunpack.c.l.b16 %v1343
    %v1378 = vunpack.c.l.b16 %v1344
    %v1379 = vpack.c.b16 %v1364, %v1363
    %v1380 = vpack.c.b16 %v1366, %v1365
    %v1381 = vpack.c.b16 %v1368, %v1367
    %v1382 = vpack.c.b16 %v1370, %v1369
    %v1383 = vpack.c.b16 %v1372, %v1371
    %v1384 = vpack.c.b16 %v1374, %v1373
    %v1385 = vpack.c.b16 %v1376, %v1375
    %v1386 = vpack.c.b16 %v1378, %v1377
    %1395 = vmatpush.bf16.msra.mxu0 %v1386
    %1396 = vmatpush.bf16.msra.mxu0 %v1385
    %1397 = vmatpush.bf16.msra.mxu0 %v1384
    %1398 = vmatpush.bf16.msra.mxu0 %v1383
    %1399 = vmatpush.bf16.msra.mxu0 %v1382
    %1400 = vmatpush.bf16.msra.mxu0 %v1381
    %1401 = vmatpush.bf16.msra.mxu0 %v1380
    %1402 = vmatpush.bf16.msra.mxu0 %v1379
    %1403 = vmatmul.bf16.gmra.mxu0 %v1326
    %v1404 = vpop.f32.mrf.mxu0
    %v1405 = vadd.f32 %v1346, %v1404
    %v1406 = vpop.f32.mrf.mxu0
    %v1407 = vadd.f32 %v1346, %v1406
    %1408 = vmatmul.bf16.gmra.mxu0 %v1327
    %v1409 = vpop.f32.mrf.mxu0
    %v1410 = vadd.f32 %v1346, %v1409
    %v1411 = vpop.f32.mrf.mxu0
    %v1412 = vadd.f32 %v1346, %v1411
    %1413 = vdwg.mxu0
    %v1414 = vmul.f32 %v1405, %v1405
    %v1415 = vmul.f32 %v1407, %v1407
    %v1416 = vmul.f32 %v1410, %v1410
    %v1417 = vmul.f32 %v1412, %v1412
    %v1418 = vmul.f32 %v1405, %v1414
    %v1419 = vmul.f32 %v1407, %v1415
    %v1420 = vmul.f32 %v1410, %v1416
    %v1421 = vmul.f32 %v1412, %v1417
    %v1422 = vmul.f32 %v1418, 0.044715
    %v1423 = vmul.f32 %v1419, 0.044715
    %v1424 = vmul.f32 %v1420, 0.044715
    %v1425 = vmul.f32 %v1421, 0.044715
    %v1426 = vadd.f32 %v1405, %v1422
    %v1427 = vadd.f32 %v1407, %v1423
    %v1428 = vadd.f32 %v1410, %v1424
    %v1429 = vadd.f32 %v1412, %v1425
    %v1430 = vmul.f32 %v1426, 0.7978846
    %v1431 = vmul.f32 %v1427, 0.7978846
    %v1432 = vmul.f32 %v1428, 0.7978846
    %v1433 = vmul.f32 %v1429, 0.7978846
    %v1434 = vtanh.pop %v1430
    %v1435 = vtanh.pop %v1431
    %v1436 = vtanh.pop %v1432
    %v1437 = vtanh.pop %v1433
    %v1438 = vadd.f32 %v1434, 1.0
    %v1439 = vadd.f32 %v1435, 1.0
    %v1440 = vadd.f32 %v1436, 1.0
    %v1441 = vadd.f32 %v1437, 1.0
    %v1442 = vmul.f32 %v1438, 0.5
    %v1443 = vmul.f32 %v1439, 0.5
    %v1444 = vmul.f32 %v1440, 0.5
    %v1445 = vmul.f32 %v1441, 0.5
    %v1446 = vmul.f32 %v1405, %v1442
    %v1447 = vmul.f32 %v1407, %v1443
    %v1448 = vmul.f32 %v1410, %v1444
    %v1449 = vmul.f32 %v1412, %v1445
    %v1450 = vpack.c.bf16 %v1447, %v1446
    %v1451 = vpack.c.bf16 %v1449, %v1448
    %s1452 = scalar_lea.vmem %s1, 640
    %v1453 = vld [vmem:[%s1452] sm:$0xf]
    %v1454 = vld [vmem:[%s1452 + $0x4] sm:$0xf]
    %v1455 = vld [vmem:[%s1452 + $0x8] sm:$0xf]
    %v1456 = vld [vmem:[%s1452 + $0xc] sm:$0xf]
    %v1457 = vld [vmem:[%s1452 + $0x10] sm:$0xf]
    %v1458 = vld [vmem:[%s1452 + $0x14] sm:$0xf]
    %v1459 = vld [vmem:[%s1452 + $0x18] sm:$0xf]
    %v1460 = vld [vmem:[%s1452 + $0x1c] sm:$0xf]
    %v1461 = vld [vmem:[%s1452 + $0x20] sm:$0xf]
    %v1462 = vld [vmem:[%s1452 + $0x24] sm:$0xf]
    %v1463 = vld [vmem:[%s1452 + $0x28] sm:$0xf]
    %v1464 = vld [vmem:[%s1452 + $0x2c] sm:$0xf]
    %v1465 = vld [vmem:[%s1452 + $0x30] sm:$0xf]
    %v1466 = vld [vmem:[%s1452 + $0x34] sm:$0xf]
    %v1467 = vld [vmem:[%s1452 + $0x38] sm:$0xf]
    %v1468 = vld [vmem:[%s1452 + $0x3c] sm:$0xf]
    %v1469 = vld [vmem:[%s2 + $0x9] sm:$0x1]
    %v1470 = vperm.slane %v1469, 0
    %v1487 = vunpack.c.l.b16 %v1453
    %v1488 = vunpack.c.l.b16 %v1454
    %v1489 = vunpack.c.l.b16 %v1455
    %v1490 = vunpack.c.l.b16 %v1456
    %v1491 = vunpack.c.l.b16 %v1457
    %v1492 = vunpack.c.l.b16 %v1458
    %v1493 = vunpack.c.l.b16 %v1459
    %v1494 = vunpack.c.l.b16 %v1460
    %v1495 = vunpack.c.l.b16 %v1461
    %v1496 = vunpack.c.l.b16 %v1462
    %v1497 = vunpack.c.l.b16 %v1463
    %v1498 = vunpack.c.l.b16 %v1464
    %v1499 = vunpack.c.l.b16 %v1465
    %v1500 = vunpack.c.l.b16 %v1466
    %v1501 = vunpack.c.l.b16 %v1467
    %v1502 = vunpack.c.l.b16 %v1468
    %v1503 = vpack.c.b16 %v1488, %v1487
    %v1504 = vpack.c.b16 %v1490, %v1489
    %v1505 = vpack.c.b16 %v1492, %v1491
    %v1506 = vpack.c.b16 %v1494, %v1493
    %v1507 = vpack.c.b16 %v1496, %v1495
    %v1508 = vpack.c.b16 %v1498, %v1497
    %v1509 = vpack.c.b16 %v1500, %v1499
    %v1510 = vpack.c.b16 %v1502, %v1501
    %1519 = vmatpush.bf16.msra.mxu0 %v1510
    %1520 = vmatpush.bf16.msra.mxu0 %v1509
    %1521 = vmatpush.bf16.msra.mxu0 %v1508
    %1522 = vmatpush.bf16.msra.mxu0 %v1507
    %1523 = vmatpush.bf16.msra.mxu0 %v1506
    %1524 = vmatpush.bf16.msra.mxu0 %v1505
    %1525 = vmatpush.bf16.msra.mxu0 %v1504
    %1526 = vmatpush.bf16.msra.mxu0 %v1503
    %1527 = vmatmul.bf16.gmra.mxu0 %v1450
    %v1528 = vpop.f32.mrf.mxu0
    %v1529 = vadd.f32 %v1470, %v1528
    %v1530 = vpop.f32.mrf.mxu0
    %v1531 = vadd.f32 %v1470, %v1530
    %1532 = vmatmul.bf16.gmra.mxu0 %v1451
    %v1533 = vpop.f32.mrf.mxu0
    %v1534 = vadd.f32 %v1470, %v1533
    %v1535 = vpop.f32.mrf.mxu0
    %v1536 = vadd.f32 %v1470, %v1535
    %1537 = vdwg.mxu0
    %v1538 = vadd.f32 %v1234, %v1529
    %v1539 = vadd.f32 %v1235, %v1531
    %v1540 = vadd.f32 %v1236, %v1534
    %v1541 = vadd.f32 %v1237, %v1536
    %1542 = vst [vmem:[#allocation2] sm:$0xff] %v1538
    %1543 = vst [vmem:[#allocation2 + $0x8] sm:$0xff] %v1539
    %1544 = vst [vmem:[#allocation2 + $0x10] sm:$0xff] %v1540
    %1545 = vst [vmem:[#allocation2 + $0x18] sm:$0xff] %v1541
    %1546 = vadd.xlane.f32.xlu0 %v1538
    %v1547 = vpop.xlane.xlu0 %1546
    %1548 = vadd.xlane.f32.xlu0 %v1539
    %v1549 = vpop.xlane.xlu0 %1548
    %1550 = vadd.xlane.f32.xlu0 %v1540
    %v1551 = vpop.xlane.xlu0 %1550
    %1552 = vadd.xlane.f32.xlu0 %v1541
    %v1553 = vpop.xlane.xlu0 %1552
    %v1554 = vmul.f32 %v1538, %v1538
    %v1555 = vmul.f32 %v1539, %v1539
    %v1556 = vmul.f32 %v1540, %v1540
    %v1557 = vmul.f32 %v1541, %v1541
    %1558 = vadd.xlane.f32.xlu0 %v1554
    %v1559 = vpop.xlane.xlu0 %1558
    %1560 = vadd.xlane.f32.xlu0 %v1555
    %v1561 = vpop.xlane.xlu0 %1560
    %1562 = vadd.xlane.f32.xlu0 %v1556
    %v1563 = vpop.xlane.xlu0 %1562
    %1564 = vadd.xlane.f32.xlu0 %v1557
    %v1565 = vpop.xlane.xlu0 %1564
    %v1566 = vmul.f32 %v1547, 0.03125
    %v1567 = vmul.f32 %v1549, 0.03125
    %v1568 = vmul.f32 %v1551, 0.03125
    %v1569 = vmul.f32 %v1553, 0.03125
    %v1570 = vmul.f32 %v1559, 0.03125
    %v1571 = vmul.f32 %v1561, 0.03125
    %v1572 = vmul.f32 %v1563, 0.03125
    %v1573 = vmul.f32 %v1565, 0.03125
    %v1574 = vmul.f32 %v1566, %v1566
    %v1575 = vmul.f32 %v1567, %v1567
    %v1576 = vmul.f32 %v1568, %v1568
    %v1577 = vmul.f32 %v1569, %v1569
    %v1578 = vsub.f32 %v1570, %v1574
    %v1579 = vsub.f32 %v1571, %v1575
    %v1580 = vsub.f32 %v1572, %v1576
    %v1581 = vsub.f32 %v1573, %v1577
    %v1582 = vsub.f32 %v1538, %v1566
    %v1583 = vsub.f32 %v1539, %v1567
    %v1584 = vsub.f32 %v1540, %v1568
    %v1585 = vsub.f32 %v1541, %v1569
    %v1586 = vadd.f32 %v1578, 1e-05
    %v1587 = vadd.f32 %v1579, 1e-05
    %v1588 = vadd.f32 %v1580, 1e-05
    %v1589 = vadd.f32 %v1581, 1e-05
    %v1590 = vrsqrt.pop %v1586
    %v1591 = vmul.f32 %v1590, %v1586
    %v1592 = vmul.f32 %v1591, %v1590
    %v1593 = vmul.f32 0.5, %v1592
    %v1594 = vsub.f32 1.5, %v1593
    %v1595 = vmul.f32 %v1590, %v1594
    %vm1596 = vweird.f32 %v1586
    %vm1597 = vweird.f32 %v1590
    %vm1598 = vmor %vm1596, %vm1597
    %v1599 = vsel %vm1598, %v1590, %v1595
    %v1600 = vrsqrt.pop %v1587
    %v1601 = vmul.f32 %v1600, %v1587
    %v1602 = vmul.f32 %v1601, %v1600
    %v1603 = vmul.f32 0.5, %v1602
    %v1604 = vsub.f32 1.5, %v1603
    %v1605 = vmul.f32 %v1600, %v1604
    %vm1606 = vweird.f32 %v1587
    %vm1607 = vweird.f32 %v1600
    %vm1608 = vmor %vm1606, %vm1607
    %v1609 = vsel %vm1608, %v1600, %v1605
    %v1610 = vrsqrt.pop %v1588
    %v1611 = vmul.f32 %v1610, %v1588
    %v1612 = vmul.f32 %v1611, %v1610
    %v1613 = vmul.f32 0.5, %v1612
    %v1614 = vsub.f32 1.5, %v1613
    %v1615 = vmul.f32 %v1610, %v1614
    %vm1616 = vweird.f32 %v1588
    %vm1617 = vweird.f32 %v1610
    %vm1618 = vmor %vm1616, %vm1617
    %v1619 = vsel %vm1618, %v1610, %v1615
    %v1620 = vrsqrt.pop %v1589
    %v1621 = vmul.f32 %v1620, %v1589
    %v1622 = vmul.f32 %v1621, %v1620
    %v1623 = vmul.f32 0.5, %v1622
    %v1624 = vsub.f32 1.5, %v1623
    %v1625 = vmul.f32 %v1620, %v1624
    %vm1626 = vweird.f32 %v1589
    %vm1627 = vweird.f32 %v1620
    %vm1628 = vmor %vm1626, %vm1627
    %v1629 = vsel %vm1628, %v1620, %v1625
    %v1630 = vmul.f32 %v1582, %v1599
    %v1631 = vmul.f32 %v1583, %v1609
    %v1632 = vmul.f32 %v1584, %v1619
    %v1633 = vmul.f32 %v1585, %v1629
    %v1634 = vpack.c.bf16 %v1631, %v1630
    %v1635 = vpack.c.bf16 %v1633, %v1632
    %s1636 = scalar_lea.vmem %s1, 704
    %v1637 = vld [vmem:[%s1636] sm:$0xf]
    %v1638 = vld [vmem:[%s1636 + $0x4] sm:$0xf]
    %v1639 = vld [vmem:[%s1636 + $0x8] sm:$0xf]
    %v1640 = vld [vmem:[%s1636 + $0xc] sm:$0xf]
    %v1641 = vld [vmem:[%s1636 + $0x10] sm:$0xf]
    %v1642 = vld [vmem:[%s1636 + $0x14] sm:$0xf]
    %v1643 = vld [vmem:[%s1636 + $0x18] sm:$0xf]
    %v1644 = vld [vmem:[%s1636 + $0x1c] sm:$0xf]
    %v1645 = vld [vmem:[%s1636 + $0x20] sm:$0xf]
    %v1646 = vld [vmem:[%s1636 + $0x24] sm:$0xf]
    %v1647 = vld [vmem:[%s1636 + $0x28] sm:$0xf]
    %v1648 = vld [vmem:[%s1636 + $0x2c] sm:$0xf]
    %v1649 = vld [vmem:[%s1636 + $0x30] sm:$0xf]
    %v1650 = vld [vmem:[%s1636 + $0x34] sm:$0xf]
    %v1651 = vld [vmem:[%s1636 + $0x38] sm:$0xf]
    %v1652 = vld [vmem:[%s1636 + $0x3c] sm:$0xf]
    %v1653 = vld [vmem:[%s2 + $0xa] sm:$0x1]
    %v1654 = vperm.slane %v1653, 0
    %v1671 = vunpack.c.l.b16 %v1637
    %v1672 = vunpack.c.l.b16 %v1638
    %v1673 = vunpack.c.l.b16 %v1639
    %v1674 = vunpack.c.l.b16 %v1640
    %v1675 = vunpack.c.l.b16 %v1641
    %v1676 = vunpack.c.l.b16 %v1642
    %v1677 = vunpack.c.l.b16 %v1643
    %v1678 = vunpack.c.l.b16 %v1644
    %v1679 = vunpack.c.l.b16 %v1645
    %v1680 = vunpack.c.l.b16 %v1646
    %v1681 = vunpack.c.l.b16 %v1647
    %v1682 = vunpack.c.l.b16 %v1648
    %v1683 = vunpack.c.l.b16 %v1649
    %v1684 = vunpack.c.l.b16 %v1650
    %v1685 = vunpack.c.l.b16 %v1651
    %v1686 = vunpack.c.l.b16 %v1652
    %v1687 = vpack.c.b16 %v1672, %v1671
    %v1688 = vpack.c.b16 %v1674, %v1673
    %v1689 = vpack.c.b16 %v1676, %v1675
    %v1690 = vpack.c.b16 %v1678, %v1677
    %v1691 = vpack.c.b16 %v1680, %v1679
    %v1692 = vpack.c.b16 %v1682, %v1681
    %v1693 = vpack.c.b16 %v1684, %v1683
    %v1694 = vpack.c.b16 %v1686, %v1685
    %1703 = vmatpush.bf16.msra.mxu0 %v1694
    %1704 = vmatpush.bf16.msra.mxu0 %v1693
    %1705 = vmatpush.bf16.msra.mxu0 %v1692
    %1706 = vmatpush.bf16.msra.mxu0 %v1691
    %1707 = vmatpush.bf16.msra.mxu0 %v1690
    %1708 = vmatpush.bf16.msra.mxu0 %v1689
    %1709 = vmatpush.bf16.msra.mxu0 %v1688
    %1710 = vmatpush.bf16.msra.mxu0 %v1687
    %1711 = vmatmul.bf16.gmra.mxu0 %v1634
    %v1712 = vpop.f32.mrf.mxu0
    %v1713 = vadd.f32 %v1654, %v1712
    %v1714 = vpop.f32.mrf.mxu0
    %v1715 = vadd.f32 %v1654, %v1714
    %1716 = vmatmul.bf16.gmra.mxu0 %v1635
    %v1717 = vpop.f32.mrf.mxu0
    %v1718 = vadd.f32 %v1654, %v1717
    %v1719 = vpop.f32.mrf.mxu0
    %v1720 = vadd.f32 %v1654, %v1719
    %1721 = vdwg.mxu0
    %1722 = vst [vmem:[%s3] sm:$0xff] %v1713
    %1723 = vst [vmem:[%s3 + $0x8] sm:$0xff] %v1715
    %1724 = vst [vmem:[%s3 + $0x10] sm:$0xff] %v1718
    %1725 = vst [vmem:[%s3 + $0x18] sm:$0xff] %v1720
    // Predicated region
    $region14: #{multimodel_seg_forward.1} parent=1 // pred_check
      _
    $region15: #{multimodel_seg_forward.1} parent=1 // pred_check_branch
      %1727 = sbr.rel (0) target = $region17
    $region16: #{multimodel_seg_forward.1} parent=1 // pred_region
      _
    $region17: #{multimodel_seg_forward.1} parent=1 // pred_fallthru
      _
    // Predicated region
    $region18: #{multimodel_seg_forward.1} parent=1 // pred_check
      _
    $region19: #{multimodel_seg_forward.1} parent=1 // pred_check_branch
      %1729 = sbr.rel (0) target = $region21
    $region20: #{multimodel_seg_forward.1} parent=1 // pred_region
      %1731 = vsyncadd [#allocation3], 0
      %s1732 = sshll.u32 [#allocation2], 4
      %s1733 = int_to_ptr.vmem [resolvable:$true] %s1732
      %s1734 = sshll.u32 %s4, 4
      %s1735 = int_to_ptr.hbm [resolvable:$true] %s1734
      %1740 = dma.vmem_to_hbm [thread:$0]  %s1733, 512, %s1735, [#allocation3], 128, 128, 8
    $region21: #{multimodel_seg_forward.1} parent=1 // pred_fallthru
      _
    // Predicated region
    $region22: #{multimodel_seg_forward.1} parent=1 // pred_check
      _
    $region23: #{multimodel_seg_forward.1} parent=1 // pred_check_branch
      %1742 = sbr.rel (0) target = $region25
    $region24: #{multimodel_seg_forward.1} parent=1 // pred_region
      _
    $region25: #{multimodel_seg_forward.1} parent=1 // pred_fallthru
      _
    // Predicated region
    $region26: #{multimodel_seg_forward.1} parent=1 // pred_check
      _
    $region27: #{multimodel_seg_forward.1} parent=1 // pred_check_branch
      %1744 = sbr.rel (0) target = $region29
    $region28: #{multimodel_seg_forward.1} parent=1 // pred_region
      %1746 = dma.done [#allocation3], 512
    $region29: #{multimodel_seg_forward.1} parent=1 // pred_fallthru
      _
    %1747 = vsyncpa [#allocation3], 1

</llo_original>
